<compile_context>
chip_gen: v5e
topology: v5e:2x2
jax: 0.10.0
libtpu: 0.0.40
codegen_flags: <defaults>
</compile_context>

<pallas_src>
import math

import jax
import jax.numpy as jnp
from jax.experimental import pallas as pl
from jax.experimental.pallas import tpu as pltpu


def _round_up(x, m):
    return (x + m - 1) // m * m


def _vmem_capacity_bytes():
    try:
        return int(pltpu.get_tpu_info().vmem_capacity_bytes)
    except Exception:
        return 64 * 1024 * 1024  # conservative (v7x per-TC VMEM)


def _pick_item_tile(items_pad):
    for t in (2048, 1024, 512, 256, 128):
        if items_pad % t == 0:
            return t
    return 128


# --------------------------------------------------------------------------
# Fused kernel (resident weights) — one batch-tiled grid axis.
# --------------------------------------------------------------------------
def _multi_vae_fused_kernel(x_ref,
                            wq0_ref, bq0_ref, wq1_ref, bq1_ref,
                            wp0_ref, bp0_ref, wp1_ref, bp1_ref,
                            out_ref):
    x = x_ref[...]                                       # (TILE_B, items_pad) f32

    # F.normalize(input, p=2, dim=1): per-row scale = 1 / max(||x||, 1e-12)
    ss = jnp.sum(x * x, axis=1, keepdims=True)
    scale = jax.lax.rsqrt(jnp.maximum(ss, 1e-24))        # EUP rsqrt

    # dropout: eval mode -> identity

    # Encoder layer 0.  Normalize scale folded AFTER the items-wide matmul:
    # no (TILE_B, items_pad) normalized f32 copy, hidden-wide VPU multiply.
    s0 = jnp.dot(x.astype(wq0_ref.dtype), wq0_ref[...],
                 preferred_element_type=jnp.float32)
    h = jnp.tanh(s0 * scale + bq0_ref[...])

    # Encoder layer 1 (mu columns only; logvar sliced off in the wrapper).
    mu = jnp.dot(h.astype(wq1_ref.dtype), wq1_ref[...],
                 preferred_element_type=jnp.float32) + bq1_ref[...]

    # reparameterize (eval mode): z = mu
    z = mu

    # Decoder.
    h = jnp.tanh(jnp.dot(z.astype(wp0_ref.dtype), wp0_ref[...],
                         preferred_element_type=jnp.float32) + bp0_ref[...])
    h = jnp.dot(h.astype(wp1_ref.dtype), wp1_ref[...],
                preferred_element_type=jnp.float32) + bp1_ref[...]

    out_ref[...] = h.astype(out_ref.dtype)


# --------------------------------------------------------------------------
# Tiled kernels (streamed big weights) — for v7x / very large n_items.
# --------------------------------------------------------------------------
def _multi_vae_encoder_kernel(x_ref, wq0_ref, bq0_ref, wq1_ref, bq1_ref,
                              wp0_ref, bp0_ref, h3_ref, acc_ref, ss_ref):
    k = pl.program_id(1)

    @pl.when(k == 0)
    def _():
        acc_ref[...] = jnp.zeros_like(acc_ref)
        ss_ref[...] = jnp.zeros_like(ss_ref)

    x = x_ref[...]                                       # (TILE_B, tile_items) f32
    ss_ref[...] += jnp.sum(x * x, axis=1, keepdims=True)
    acc_ref[...] += jnp.dot(x.astype(wq0_ref.dtype), wq0_ref[...],
                            preferred_element_type=jnp.float32)

    @pl.when(k == pl.num_programs(1) - 1)
    def _():
        scale = jax.lax.rsqrt(jnp.maximum(ss_ref[...], 1e-24))
        h1 = jnp.tanh(acc_ref[...] * scale + bq0_ref[...])
        mu = jnp.dot(h1.astype(wq1_ref.dtype), wq1_ref[...],
                     preferred_element_type=jnp.float32) + bq1_ref[...]
        z = mu                                           # reparameterize (eval)
        h3 = jnp.tanh(jnp.dot(z.astype(wp0_ref.dtype), wp0_ref[...],
                              preferred_element_type=jnp.float32) + bp0_ref[...])
        h3_ref[...] = h3.astype(h3_ref.dtype)


def _multi_vae_decoder_kernel(h3_ref, wp1_ref, bp1_ref, out_ref):
    out = jnp.dot(h3_ref[...], wp1_ref[...],
                  preferred_element_type=jnp.float32) + bp1_ref[...]
    out_ref[...] = out.astype(out_ref.dtype)


# --------------------------------------------------------------------------
# Parameter prep: pad to 128-multiples, drop logvar columns, cast to bf16
# --------------------------------------------------------------------------
def prepare_params(params, p_dims, compute_dtype=jnp.bfloat16, pad_to=128):
    assert len(p_dims) == 3, "kernel implements the standard 2+2 layer MultiVAE"
    latent, hidden, n_items = p_dims[0], p_dims[1], p_dims[2]
    latent_pad = _round_up(latent, pad_to)
    hidden_pad = _round_up(hidden, pad_to)
    items_pad = _round_up(n_items, pad_to)

    def pad2(a, rows, cols, dtype):
        out = jnp.zeros((rows, cols), dtype)
        return out.at[:a.shape[0], :a.shape[1]].set(a.astype(dtype))

    return {
        "latent": latent, "hidden": hidden, "n_items": n_items,
        "latent_pad": latent_pad, "hidden_pad": hidden_pad, "items_pad": items_pad,
        # encoder layer 0: (n_items, hidden)
        "wq0": pad2(params["wq0"], items_pad, hidden_pad, compute_dtype),
        "bq0": pad2(params["bq0"], 1, hidden_pad, jnp.float32),
        # encoder layer 1, mu columns only: (hidden, latent)
        "wq1": pad2(params["wq1"][:, :latent], hidden_pad, latent_pad, compute_dtype),
        "bq1": pad2(params["bq1"][:, :latent], 1, latent_pad, jnp.float32),
        # decoder layer 0: (latent, hidden)
        "wp0": pad2(params["wp0"], latent_pad, hidden_pad, compute_dtype),
        "bp0": pad2(params["bp0"], 1, hidden_pad, jnp.float32),
        # decoder layer 1: (hidden, n_items)
        "wp1": pad2(params["wp1"], hidden_pad, items_pad, compute_dtype),
        "bp1": pad2(params["bp1"], 1, items_pad, jnp.float32),
    }


# --------------------------------------------------------------------------
# Forward paths
# --------------------------------------------------------------------------
def _weight_spec(shape, index_map, single_buffer):
    if single_buffer:
        return pl.BlockSpec(shape, index_map, pipeline_mode=pl.Buffered(1))
    return pl.BlockSpec(shape, index_map)


def _forward_resident(xp, prep, tile_b, out_dtype, single_buffer, vmem_cap):
    B_pad, items_pad = xp.shape
    hidden_pad, latent_pad = prep["hidden_pad"], prep["latent_pad"]
    flat = (prep["wq0"], prep["bq0"], prep["wq1"], prep["bq1"],
            prep["wp0"], prep["bp0"], prep["wp1"], prep["bp1"])

    weight_bytes = sum(int(a.size) * a.dtype.itemsize for a in flat)
    out_isz = jnp.dtype(out_dtype).itemsize
    w_buf = 1 if single_buffer else 2
    vmem_need = (w_buf * weight_bytes
                 + 2 * tile_b * items_pad * 4            # x tile (double buffered)
                 + 2 * tile_b * items_pad * out_isz      # out tile (double buffered)
                 + tile_b * items_pad * (2 + 4)          # bf16 x copy + f32 last matmul
                 + 4 * tile_b * (2 * hidden_pad + latent_pad) * 4)
    vmem_bytes = min(int(vmem_need * 1.25) + (2 << 20), vmem_cap)

    flops = 2 * B_pad * (items_pad * hidden_pad + hidden_pad * latent_pad
                         + latent_pad * hidden_pad + hidden_pad * items_pad)
    cost = pl.CostEstimate(
        flops=flops,
        transcendentals=2 * B_pad * hidden_pad + B_pad,
        bytes_accessed=weight_bytes + B_pad * items_pad * (4 + out_isz))

    in_specs = [pl.BlockSpec((tile_b, items_pad), lambda i: (i, 0))]
    in_specs += [_weight_spec(a.shape, lambda i: (0, 0), single_buffer) for a in flat]

    return pl.pallas_call(
        _multi_vae_fused_kernel,
        out_shape=jax.ShapeDtypeStruct((B_pad, items_pad), out_dtype),
        grid=(B_pad // tile_b,),
        in_specs=in_specs,
        out_specs=pl.BlockSpec((tile_b, items_pad), lambda i: (i, 0)),
        compiler_params=pltpu.CompilerParams(
            dimension_semantics=("parallel",),
            vmem_limit_bytes=int(vmem_bytes)),
        cost_estimate=cost,
    )(xp, *flat)


def _forward_tiled(xp, prep, tile_b, out_dtype, single_buffer, vmem_cap):
    B_pad, items_pad = xp.shape
    hidden_pad = prep["hidden_pad"]
    tile_items = _pick_item_tile(items_pad)
    nb = B_pad // tile_b
    nk = items_pad // tile_items
    out_isz = jnp.dtype(out_dtype).itemsize

    small = ("bq0", "wq1", "bq1", "wp0", "bp0")
    small_bytes = sum(int(prep[n].size) * prep[n].dtype.itemsize for n in small)

    # ---- encoder: K-tiled over the items axis, f32 accumulator scratch ----
    enc_need = (small_bytes
                + 2 * (tile_b * tile_items * 4 + tile_items * hidden_pad * 2)
                + 2 * tile_b * hidden_pad * 2
                + tile_b * (hidden_pad + 1) * 4
                + tile_b * tile_items * 2
                + 6 * tile_b * hidden_pad * 4)
    enc_vmem = min(int(enc_need * 1.25) + (2 << 20), vmem_cap)

    h3 = pl.pallas_call(
        _multi_vae_encoder_kernel,
        out_shape=jax.ShapeDtypeStruct((B_pad, hidden_pad), jnp.bfloat16),
        grid=(nb, nk),
        in_specs=[
            pl.BlockSpec((tile_b, tile_items), lambda b, k: (b, k)),
            pl.BlockSpec((tile_items, hidden_pad), lambda b, k: (k, 0)),
            _weight_spec(prep["bq0"].shape, lambda b, k: (0, 0), single_buffer),
            _weight_spec(prep["wq1"].shape, lambda b, k: (0, 0), single_buffer),
            _weight_spec(prep["bq1"].shape, lambda b, k: (0, 0), single_buffer),
            _weight_spec(prep["wp0"].shape, lambda b, k: (0, 0), single_buffer),
            _weight_spec(prep["bp0"].shape, lambda b, k: (0, 0), single_buffer),
        ],
        out_specs=pl.BlockSpec((tile_b, hidden_pad), lambda b, k: (b, 0)),
        scratch_shapes=[pltpu.VMEM((tile_b, hidden_pad), jnp.float32),
                        pltpu.VMEM((tile_b, 1), jnp.float32)],
        compiler_params=pltpu.CompilerParams(
            dimension_semantics=("parallel", "arbitrary"),
            vmem_limit_bytes=int(enc_vmem)),
    )(xp, prep["wq0"], prep["bq0"], prep["wq1"], prep["bq1"],
      prep["wp0"], prep["bp0"])

    # ---- decoder: N-tiled over the items axis (items outer so each wp1
    # column block is fetched once, tiny h3 tile re-fetched per batch tile) ----
    dec_need = (2 * (tile_b * hidden_pad * 2
                     + hidden_pad * tile_items * 2
                     + tile_items * 4
                     + tile_b * tile_items * out_isz)
                + tile_b * tile_items * 4)
    dec_vmem = min(int(dec_need * 1.25) + (2 << 20), vmem_cap)

    out = pl.pallas_call(
        _multi_vae_decoder_kernel,
        out_shape=jax.ShapeDtypeStruct((B_pad, items_pad), out_dtype),
        grid=(nk, nb),
        in_specs=[
            pl.BlockSpec((tile_b, hidden_pad), lambda n, b: (b, 0)),
            pl.BlockSpec((hidden_pad, tile_items), lambda n, b: (0, n)),
            pl.BlockSpec((1, tile_items), lambda n, b: (0, n)),
        ],
        out_specs=pl.BlockSpec((tile_b, tile_items), lambda n, b: (b, n)),
        compiler_params=pltpu.CompilerParams(
            dimension_semantics=("parallel", "parallel"),
            vmem_limit_bytes=int(dec_vmem)),
    )(h3, prep["wp1"], prep["bp1"])
    return out


def multi_vae_forward(x, prep, tile_b=128, mode="auto", out_dtype=jnp.bfloat16,
                      single_buffer_weights=True):
    """x: (B, n_items) float32. prep: output of prepare_params().

    mode: "resident" (weights VMEM-resident, best on v5e/v6e),
          "tiled" (items axis streamed via BlockSpec, for v7x / huge n_items),
          "auto" (pick by estimated footprint vs VMEM capacity).
    tile_b: 128 (right MXU M on v5e / v7x); 256 recommended on v6e at
            production sizes once weights are single-buffered.
    """
    B, n_items = x.shape
    assert n_items == prep["n_items"]
    items_pad = prep["items_pad"]
    hidden_pad, latent_pad = prep["hidden_pad"], prep["latent_pad"]

    B_pad = _round_up(max(B, 1), tile_b)
    xp = jnp.zeros((B_pad, items_pad), jnp.float32)
    xp = xp.at[:B, :n_items].set(x.astype(jnp.float32))

    vmem_cap = max(_vmem_capacity_bytes() - (12 << 20), 32 << 20)

    if mode == "auto":
        flat = (prep["wq0"], prep["bq0"], prep["wq1"], prep["bq1"],
                prep["wp0"], prep["bp0"], prep["wp1"], prep["bp1"])
        weight_bytes = sum(int(a.size) * a.dtype.itemsize for a in flat)
        out_isz = jnp.dtype(out_dtype).itemsize
        resident_need = (weight_bytes
                         + tile_b * items_pad * (2 * 4 + 2 * out_isz + 6)
                         + 4 * tile_b * (2 * hidden_pad + latent_pad) * 4)
        mode = "resident" if int(resident_need * 1.25) <= vmem_cap else "tiled"

    def run(sbw):
        if mode == "resident":
            return _forward_resident(xp, prep, tile_b, out_dtype, sbw, vmem_cap)
        return _forward_tiled(xp, prep, tile_b, out_dtype, sbw, vmem_cap)

    if single_buffer_weights:
        try:
            out = run(True)
        except Exception:
            # pl.Buffered(1) not accepted on this JAX build -> default buffering.
            out = run(False)
    else:
        out = run(False)

    return out[:B, :n_items]


# --------------------------------------------------------------------------
# Init (mirrors MultiVAE.init_weights; weights pre-transposed to (d_in, d_out))
# --------------------------------------------------------------------------
def init_params(key, p_dims):
    q_dims = p_dims[::-1]
    temp_q_dims = q_dims[:-1] + [q_dims[-1] * 2]

    def make_linear(key, d_in, d_out):
        kw, kb = jax.random.split(key)
        std = math.sqrt(2.0 / (d_in + d_out))
        w = jax.random.normal(kw, (d_in, d_out), jnp.float32) * std
        b = jax.random.normal(kb, (1, d_out), jnp.float32) * 0.001
        return w, b

    keys = jax.random.split(key, 4)
    params = {}
    (params["wq0"], params["bq0"]) = make_linear(keys[0], temp_q_dims[0], temp_q_dims[1])
    (params["wq1"], params["bq1"]) = make_linear(keys[1], temp_q_dims[1], temp_q_dims[2])
    (params["wp0"], params["bp0"]) = make_linear(keys[2], p_dims[0], p_dims[1])
    (params["wp1"], params["bp1"]) = make_linear(keys[3], p_dims[1], p_dims[2])
    return params


# --------------------------------------------------------------------------
# References for validation
# --------------------------------------------------------------------------
def multi_vae_ref_matched(x, prep):
    """Pure-JAX reference mirroring the kernel math (bf16 weights, folded scale)."""
    B, n_items = x.shape
    xp = jnp.zeros((B, prep["items_pad"]), jnp.float32).at[:, :n_items].set(x)
    ss = jnp.sum(xp * xp, axis=1, keepdims=True)
    scale = jax.lax.rsqrt(jnp.maximum(ss, 1e-24))
    s0 = jnp.dot(xp.astype(jnp.bfloat16), prep["wq0"],
                 preferred_element_type=jnp.float32)
    h = jnp.tanh(s0 * scale + prep["bq0"])
    mu = jnp.dot(h.astype(jnp.bfloat16), prep["wq1"],
                 preferred_element_type=jnp.float32) + prep["bq1"]
    h = jnp.tanh(jnp.dot(mu.astype(jnp.bfloat16), prep["wp0"],
                         preferred_element_type=jnp.float32) + prep["bp0"])
    h = jnp.dot(h.astype(jnp.bfloat16), prep["wp1"],
                preferred_element_type=jnp.float32) + prep["bp1"]
    return h[:, :n_items]


def multi_vae_ref_f32(x, params):
    """Full-precision reference on the raw (unpadded) params."""
    norm = jnp.sqrt(jnp.sum(x * x, axis=1, keepdims=True))
    h = x / jnp.maximum(norm, 1e-12)
    h = jnp.tanh(h @ params["wq0"] + params["bq0"])
    h = h @ params["wq1"] + params["bq1"]
    latent = params["wp0"].shape[0]
    mu = h[:, :latent]
    h = jnp.tanh(mu @ params["wp0"] + params["bp0"])
    return h @ params["wp1"] + params["bp1"]


if __name__ == "__main__":
    # p_dims = [latent, hidden, n_items]  (decoder dims, as in MultiVAE)
    p_dims = [32, 64, 128]
    batch = 8
    n_items = p_dims[-1]

    key = jax.random.PRNGKey(0)
    k_param, k_x = jax.random.split(key)
    params = init_params(k_param, p_dims)
    prep = prepare_params(params, p_dims)

    # Synthetic "interaction" input (non-negative like implicit feedback counts).
    x = jnp.abs(jax.random.normal(k_x, (batch, n_items), jnp.float32))

    # Exercise both code paths (resident = v5e/v6e layout, tiled = v7x layout).
    out_res = multi_vae_forward(x, prep, tile_b=128, mode="resident")
    out_til = multi_vae_forward(x, prep, tile_b=128, mode="tiled")
    out_res, out_til = jax.block_until_ready((out_res, out_til))
    assert out_res.shape == (batch, n_items)
    assert out_til.shape == (batch, n_items)

    out_res_f = out_res.astype(jnp.float32)
    out_til_f = out_til.astype(jnp.float32)
    ref_m = multi_vae_ref_matched(x, prep)
    ref_f = multi_vae_ref_f32(x, params)

    err_paths = float(jnp.max(jnp.abs(out_res_f - out_til_f)))
    assert err_paths < 2e-2, f"resident vs tiled mismatch: {err_paths}"
    err_matched = float(jnp.max(jnp.abs(out_res_f - ref_m)))
    assert err_matched < 2e-2, f"mismatch vs bf16-matched ref: {err_matched}"
    err_f32 = float(jnp.max(jnp.abs(out_res_f - ref_f)))
    assert err_f32 < 6e-2, f"mismatch vs f32 ref: {err_f32}"

    print("KERNEL_OK")
</pallas_src>

<mosaic_0001>
module attributes {stable_mosaic.version = 11 : i64} {
  func.func @_multi_vae_fused_kernel(%arg0: i32, %arg1: memref<128x128xf32, #tpu.memory_space<vmem>>, %arg2: memref<128x128xbf16, #tpu.memory_space<vmem>>, %arg3: memref<1x128xf32, #tpu.memory_space<vmem>>, %arg4: memref<128x128xbf16, #tpu.memory_space<vmem>>, %arg5: memref<1x128xf32, #tpu.memory_space<vmem>>, %arg6: memref<128x128xbf16, #tpu.memory_space<vmem>>, %arg7: memref<1x128xf32, #tpu.memory_space<vmem>>, %arg8: memref<128x128xbf16, #tpu.memory_space<vmem>>, %arg9: memref<1x128xf32, #tpu.memory_space<vmem>>, %arg10: memref<128x128xbf16, #tpu.memory_space<vmem>>) attributes {dimension_semantics = [#tpu.dimension_semantics<parallel>], iteration_bounds = array<i64: 1>, scalar_prefetch = 0 : i64, scratch_operands = 0 : i64, tpu.core_type = #tpu.core_type<tc>, window_params = [{transform_indices = @transform_0, window_bounds = array<i64: 128, 128>}, {pipeline_mode = #tpu.pipeline_mode<synchronous>, transform_indices = @transform_1, window_bounds = array<i64: 128, 128>}, {pipeline_mode = #tpu.pipeline_mode<synchronous>, transform_indices = @transform_2, window_bounds = array<i64: 1, 128>}, {pipeline_mode = #tpu.pipeline_mode<synchronous>, transform_indices = @transform_3, window_bounds = array<i64: 128, 128>}, {pipeline_mode = #tpu.pipeline_mode<synchronous>, transform_indices = @transform_4, window_bounds = array<i64: 1, 128>}, {pipeline_mode = #tpu.pipeline_mode<synchronous>, transform_indices = @transform_5, window_bounds = array<i64: 128, 128>}, {pipeline_mode = #tpu.pipeline_mode<synchronous>, transform_indices = @transform_6, window_bounds = array<i64: 1, 128>}, {pipeline_mode = #tpu.pipeline_mode<synchronous>, transform_indices = @transform_7, window_bounds = array<i64: 128, 128>}, {pipeline_mode = #tpu.pipeline_mode<synchronous>, transform_indices = @transform_8, window_bounds = array<i64: 1, 128>}, {transform_indices = @transform_9, window_bounds = array<i64: 128, 128>}]} {
    %c0 = arith.constant 0 : index
    %c0_0 = arith.constant 0 : index
    %0 = vector.load %arg1[%c0, %c0_0] : memref<128x128xf32, #tpu.memory_space<vmem>>, vector<128x128xf32>
    %1 = arith.mulf %0, %0 : vector<128x128xf32>
    %cst = arith.constant dense<0.000000e+00> : vector<128xf32>
    %2 = vector.multi_reduction <add>, %1, %cst [1] : vector<128x128xf32> to vector<128xf32>
    %3 = vector.shape_cast %2 : vector<128xf32> to vector<128x1xf32>
    %cst_1 = arith.constant 1.000000e-24 : f32
    %4 = vector.broadcast %cst_1 : f32 to vector<128x1xf32>
    %5 = arith.maximumf %3, %4 : vector<128x1xf32>
    %6 = math.rsqrt %5 : vector<128x1xf32>
    %7 = arith.truncf %0 : vector<128x128xf32> to vector<128x128xbf16>
    %c0_2 = arith.constant 0 : index
    %c0_3 = arith.constant 0 : index
    %8 = vector.load %arg2[%c0_2, %c0_3] : memref<128x128xbf16, #tpu.memory_space<vmem>>, vector<128x128xbf16>
    %cst_4 = arith.constant dense<0.000000e+00> : vector<128x128xf32>
    %9 = tpu.matmul %7, %8, %cst_4 {dimension_numbers = #tpu.dot_dimension_numbers<[1], [0], [0], [1], [0, 0, 1, 1], [], []>} : vector<128x128xbf16>, vector<128x128xbf16>, vector<128x128xf32> -> vector<128x128xf32>
    %10 = vector.broadcast %6 : vector<128x1xf32> to vector<128x128xf32>
    %11 = arith.mulf %9, %10 : vector<128x128xf32>
    %c0_5 = arith.constant 0 : index
    %c0_6 = arith.constant 0 : index
    %12 = vector.load %arg3[%c0_5, %c0_6] : memref<1x128xf32, #tpu.memory_space<vmem>>, vector<1x128xf32>
    %13 = vector.broadcast %12 : vector<1x128xf32> to vector<128x128xf32>
    %14 = arith.addf %11, %13 : vector<128x128xf32>
    %15 = math.tanh %14 : vector<128x128xf32>
    %16 = arith.truncf %15 : vector<128x128xf32> to vector<128x128xbf16>
    %c0_7 = arith.constant 0 : index
    %c0_8 = arith.constant 0 : index
    %17 = vector.load %arg4[%c0_7, %c0_8] : memref<128x128xbf16, #tpu.memory_space<vmem>>, vector<128x128xbf16>
    %cst_9 = arith.constant dense<0.000000e+00> : vector<128x128xf32>
    %18 = tpu.matmul %16, %17, %cst_9 {dimension_numbers = #tpu.dot_dimension_numbers<[1], [0], [0], [1], [0, 0, 1, 1], [], []>} : vector<128x128xbf16>, vector<128x128xbf16>, vector<128x128xf32> -> vector<128x128xf32>
    %c0_10 = arith.constant 0 : index
    %c0_11 = arith.constant 0 : index
    %19 = vector.load %arg5[%c0_10, %c0_11] : memref<1x128xf32, #tpu.memory_space<vmem>>, vector<1x128xf32>
    %20 = vector.broadcast %19 : vector<1x128xf32> to vector<128x128xf32>
    %21 = arith.addf %18, %20 : vector<128x128xf32>
    %22 = arith.truncf %21 : vector<128x128xf32> to vector<128x128xbf16>
    %c0_12 = arith.constant 0 : index
    %c0_13 = arith.constant 0 : index
    %23 = vector.load %arg6[%c0_12, %c0_13] : memref<128x128xbf16, #tpu.memory_space<vmem>>, vector<128x128xbf16>
    %cst_14 = arith.constant dense<0.000000e+00> : vector<128x128xf32>
    %24 = tpu.matmul %22, %23, %cst_14 {dimension_numbers = #tpu.dot_dimension_numbers<[1], [0], [0], [1], [0, 0, 1, 1], [], []>} : vector<128x128xbf16>, vector<128x128xbf16>, vector<128x128xf32> -> vector<128x128xf32>
    %c0_15 = arith.constant 0 : index
    %c0_16 = arith.constant 0 : index
    %25 = vector.load %arg7[%c0_15, %c0_16] : memref<1x128xf32, #tpu.memory_space<vmem>>, vector<1x128xf32>
    %26 = vector.broadcast %25 : vector<1x128xf32> to vector<128x128xf32>
    %27 = arith.addf %24, %26 : vector<128x128xf32>
    %28 = math.tanh %27 : vector<128x128xf32>
    %29 = arith.truncf %28 : vector<128x128xf32> to vector<128x128xbf16>
    %c0_17 = arith.constant 0 : index
    %c0_18 = arith.constant 0 : index
    %30 = vector.load %arg8[%c0_17, %c0_18] : memref<128x128xbf16, #tpu.memory_space<vmem>>, vector<128x128xbf16>
    %cst_19 = arith.constant dense<0.000000e+00> : vector<128x128xf32>
    %31 = tpu.matmul %29, %30, %cst_19 {dimension_numbers = #tpu.dot_dimension_numbers<[1], [0], [0], [1], [0, 0, 1, 1], [], []>} : vector<128x128xbf16>, vector<128x128xbf16>, vector<128x128xf32> -> vector<128x128xf32>
    %c0_20 = arith.constant 0 : index
    %c0_21 = arith.constant 0 : index
    %32 = vector.load %arg9[%c0_20, %c0_21] : memref<1x128xf32, #tpu.memory_space<vmem>>, vector<1x128xf32>
    %33 = vector.broadcast %32 : vector<1x128xf32> to vector<128x128xf32>
    %34 = arith.addf %31, %33 : vector<128x128xf32>
    %35 = arith.truncf %34 : vector<128x128xf32> to vector<128x128xbf16>
    %c0_22 = arith.constant 0 : index
    %c0_23 = arith.constant 0 : index
    %36 = vector.load %arg10[%c0_22, %c0_23] : memref<128x128xbf16, #tpu.memory_space<vmem>>, vector<128x128xbf16>
    tpu.vector_store %arg10[%c0_22, %c0_23], %35 {strides = array<i32>} : memref<128x128xbf16, #tpu.memory_space<vmem>>, vector<128x128xbf16>,
    return
  }
  func.func @transform_0(%arg0: i32) -> (i32, i32) {
    %c0_i32 = arith.constant 0 : i32
    %c0_i32_0 = arith.constant 0 : i32
    return %arg0, %c0_i32 : i32, i32
  }
  func.func @transform_1(%arg0: i32) -> (i32, i32) {
    %c0_i32 = arith.constant 0 : i32
    %c0_i32_0 = arith.constant 0 : i32
    %c0_i32_1 = arith.constant 0 : i32
    return %c0_i32, %c0_i32_0 : i32, i32
  }
  func.func @transform_2(%arg0: i32) -> (i32, i32) {
    %c0_i32 = arith.constant 0 : i32
    %c0_i32_0 = arith.constant 0 : i32
    %c0_i32_1 = arith.constant 0 : i32
    return %c0_i32, %c0_i32_0 : i32, i32
  }
  func.func @transform_3(%arg0: i32) -> (i32, i32) {
    %c0_i32 = arith.constant 0 : i32
    %c0_i32_0 = arith.constant 0 : i32
    %c0_i32_1 = arith.constant 0 : i32
    return %c0_i32, %c0_i32_0 : i32, i32
  }
  func.func @transform_4(%arg0: i32) -> (i32, i32) {
    %c0_i32 = arith.constant 0 : i32
    %c0_i32_0 = arith.constant 0 : i32
    %c0_i32_1 = arith.constant 0 : i32
    return %c0_i32, %c0_i32_0 : i32, i32
  }
  func.func @transform_5(%arg0: i32) -> (i32, i32) {
    %c0_i32 = arith.constant 0 : i32
    %c0_i32_0 = arith.constant 0 : i32
    %c0_i32_1 = arith.constant 0 : i32
    return %c0_i32, %c0_i32_0 : i32, i32
  }
  func.func @transform_6(%arg0: i32) -> (i32, i32) {
    %c0_i32 = arith.constant 0 : i32
    %c0_i32_0 = arith.constant 0 : i32
    %c0_i32_1 = arith.constant 0 : i32
    return %c0_i32, %c0_i32_0 : i32, i32
  }
  func.func @transform_7(%arg0: i32) -> (i32, i32) {
    %c0_i32 = arith.constant 0 : i32
    %c0_i32_0 = arith.constant 0 : i32
    %c0_i32_1 = arith.constant 0 : i32
    return %c0_i32, %c0_i32_0 : i32, i32
  }
  func.func @transform_8(%arg0: i32) -> (i32, i32) {
    %c0_i32 = arith.constant 0 : i32
    %c0_i32_0 = arith.constant 0 : i32
    %c0_i32_1 = arith.constant 0 : i32
    return %c0_i32, %c0_i32_0 : i32, i32
  }
  func.func @transform_9(%arg0: i32) -> (i32, i32) {
    %c0_i32 = arith.constant 0 : i32
    %c0_i32_0 = arith.constant 0 : i32
    return %arg0, %c0_i32 : i32, i32
  }
}

module attributes {stable_mosaic.version = 11 : i64} {
  func.func @_multi_vae_fused_kernel(%arg0: i32, %arg1: memref<128x128xf32, #tpu.memory_space<vmem>>, %arg2: memref<128x128xbf16, #tpu.memory_space<vmem>>, %arg3: memref<1x128xf32, #tpu.memory_space<vmem>>, %arg4: memref<128x128xbf16, #tpu.memory_space<vmem>>, %arg5: memref<1x128xf32, #tpu.memory_space<vmem>>, %arg6: memref<128x128xbf16, #tpu.memory_space<vmem>>, %arg7: memref<1x128xf32, #tpu.memory_space<vmem>>, %arg8: memref<128x128xbf16, #tpu.memory_space<vmem>>, %arg9: memref<1x128xf32, #tpu.memory_space<vmem>>, %arg10: memref<128x128xbf16, #tpu.memory_space<vmem>>) attributes {dimension_semantics = [#tpu.dimension_semantics<parallel>], iteration_bounds = array<i64: 1>, scalar_prefetch = 0 : i64, scratch_operands = 0 : i64, tpu.core_type = #tpu.core_type<tc>, window_params = [{transform_indices = @transform_0, window_bounds = array<i64: 128, 128>}, {pipeline_mode = #tpu.pipeline_mode<synchronous>, transform_indices = @transform_1, window_bounds = array<i64: 128, 128>}, {pipeline_mode = #tpu.pipeline_mode<synchronous>, transform_indices = @transform_2, window_bounds = array<i64: 1, 128>}, {pipeline_mode = #tpu.pipeline_mode<synchronous>, transform_indices = @transform_3, window_bounds = array<i64: 128, 128>}, {pipeline_mode = #tpu.pipeline_mode<synchronous>, transform_indices = @transform_4, window_bounds = array<i64: 1, 128>}, {pipeline_mode = #tpu.pipeline_mode<synchronous>, transform_indices = @transform_5, window_bounds = array<i64: 128, 128>}, {pipeline_mode = #tpu.pipeline_mode<synchronous>, transform_indices = @transform_6, window_bounds = array<i64: 1, 128>}, {pipeline_mode = #tpu.pipeline_mode<synchronous>, transform_indices = @transform_7, window_bounds = array<i64: 128, 128>}, {pipeline_mode = #tpu.pipeline_mode<synchronous>, transform_indices = @transform_8, window_bounds = array<i64: 1, 128>}, {transform_indices = @transform_9, window_bounds = array<i64: 128, 128>}]} {
    %c0 = arith.constant 0 : index
    %c0_0 = arith.constant 0 : index
    %0 = vector.load %arg1[%c0, %c0_0] : memref<128x128xf32, #tpu.memory_space<vmem>>, vector<128x128xf32>
    %1 = arith.mulf %0, %0 : vector<128x128xf32>
    %cst = arith.constant dense<0.000000e+00> : vector<128xf32>
    %2 = vector.multi_reduction <add>, %1, %cst [1] : vector<128x128xf32> to vector<128xf32>
    %3 = vector.shape_cast %2 : vector<128xf32> to vector<128x1xf32>
    %cst_1 = arith.constant 1.000000e-24 : f32
    %4 = vector.broadcast %cst_1 : f32 to vector<128x1xf32>
    %5 = arith.maximumf %3, %4 : vector<128x1xf32>
    %6 = math.rsqrt %5 : vector<128x1xf32>
    %7 = arith.truncf %0 : vector<128x128xf32> to vector<128x128xbf16>
    %c0_2 = arith.constant 0 : index
    %c0_3 = arith.constant 0 : index
    %8 = vector.load %arg2[%c0_2, %c0_3] : memref<128x128xbf16, #tpu.memory_space<vmem>>, vector<128x128xbf16>
    %cst_4 = arith.constant dense<0.000000e+00> : vector<128x128xf32>
    %9 = tpu.matmul %7, %8, %cst_4 {dimension_numbers = #tpu.dot_dimension_numbers<[1], [0], [0], [1], [0, 0, 1, 1], [], []>} : vector<128x128xbf16>, vector<128x128xbf16>, vector<128x128xf32> -> vector<128x128xf32>
    %10 = vector.broadcast %6 : vector<128x1xf32> to vector<128x128xf32>
    %11 = arith.mulf %9, %10 : vector<128x128xf32>
    %c0_5 = arith.constant 0 : index
    %c0_6 = arith.constant 0 : index
    %12 = vector.load %arg3[%c0_5, %c0_6] : memref<1x128xf32, #tpu.memory_space<vmem>>, vector<1x128xf32>
    %13 = vector.broadcast %12 : vector<1x128xf32> to vector<128x128xf32>
    %14 = arith.addf %11, %13 : vector<128x128xf32>
    %15 = math.tanh %14 : vector<128x128xf32>
    %16 = arith.truncf %15 : vector<128x128xf32> to vector<128x128xbf16>
    %c0_7 = arith.constant 0 : index
    %c0_8 = arith.constant 0 : index
    %17 = vector.load %arg4[%c0_7, %c0_8] : memref<128x128xbf16, #tpu.memory_space<vmem>>, vector<128x128xbf16>
    %cst_9 = arith.constant dense<0.000000e+00> : vector<128x128xf32>
    %18 = tpu.matmul %16, %17, %cst_9 {dimension_numbers = #tpu.dot_dimension_numbers<[1], [0], [0], [1], [0, 0, 1, 1], [], []>} : vector<128x128xbf16>, vector<128x128xbf16>, vector<128x128xf32> -> vector<128x128xf32>
    %c0_10 = arith.constant 0 : index
    %c0_11 = arith.constant 0 : index
    %19 = vector.load %arg5[%c0_10, %c0_11] : memref<1x128xf32, #tpu.memory_space<vmem>>, vector<1x128xf32>
    %20 = vector.broadcast %19 : vector<1x128xf32> to vector<128x128xf32>
    %21 = arith.addf %18, %20 : vector<128x128xf32>
    %22 = arith.truncf %21 : vector<128x128xf32> to vector<128x128xbf16>
    %c0_12 = arith.constant 0 : index
    %c0_13 = arith.constant 0 : index
    %23 = vector.load %arg6[%c0_12, %c0_13] : memref<128x128xbf16, #tpu.memory_space<vmem>>, vector<128x128xbf16>
    %cst_14 = arith.constant dense<0.000000e+00> : vector<128x128xf32>
    %24 = tpu.matmul %22, %23, %cst_14 {dimension_numbers = #tpu.dot_dimension_numbers<[1], [0], [0], [1], [0, 0, 1, 1], [], []>} : vector<128x128xbf16>, vector<128x128xbf16>, vector<128x128xf32> -> vector<128x128xf32>
    %c0_15 = arith.constant 0 : index
    %c0_16 = arith.constant 0 : index
    %25 = vector.load %arg7[%c0_15, %c0_16] : memref<1x128xf32, #tpu.memory_space<vmem>>, vector<1x128xf32>
    %26 = vector.broadcast %25 : vector<1x128xf32> to vector<128x128xf32>
    %27 = arith.addf %24, %26 : vector<128x128xf32>
    %28 = math.tanh %27 : vector<128x128xf32>
    %29 = arith.truncf %28 : vector<128x128xf32> to vector<128x128xbf16>
    %c0_17 = arith.constant 0 : index
    %c0_18 = arith.constant 0 : index
    %30 = vector.load %arg8[%c0_17, %c0_18] : memref<128x128xbf16, #tpu.memory_space<vmem>>, vector<128x128xbf16>
    %cst_19 = arith.constant dense<0.000000e+00> : vector<128x128xf32>
    %31 = tpu.matmul %29, %30, %cst_19 {dimension_numbers = #tpu.dot_dimension_numbers<[1], [0], [0], [1], [0, 0, 1, 1], [], []>} : vector<128x128xbf16>, vector<128x128xbf16>, vector<128x128xf32> -> vector<128x128xf32>
    %c0_20 = arith.constant 0 : index
    %c0_21 = arith.constant 0 : index
    %32 = vector.load %arg9[%c0_20, %c0_21] : memref<1x128xf32, #tpu.memory_space<vmem>>, vector<1x128xf32>
    %33 = vector.broadcast %32 : vector<1x128xf32> to vector<128x128xf32>
    %34 = arith.addf %31, %33 : vector<128x128xf32>
    %35 = arith.truncf %34 : vector<128x128xf32> to vector<128x128xbf16>
    %c0_22 = arith.constant 0 : index
    %c0_23 = arith.constant 0 : index
    %36 = vector.load %arg10[%c0_22, %c0_23] : memref<128x128xbf16, #tpu.memory_space<vmem>>, vector<128x128xbf16>
    tpu.vector_store %arg10[%c0_22, %c0_23], %35 {strides = array<i32>} : memref<128x128xbf16, #tpu.memory_space<vmem>>, vector<128x128xbf16>,
    return
  }
  func.func @transform_0(%arg0: i32) -> (i32, i32) {
    %c0_i32 = arith.constant 0 : i32
    %c0_i32_0 = arith.constant 0 : i32
    return %arg0, %c0_i32 : i32, i32
  }
  func.func @transform_1(%arg0: i32) -> (i32, i32) {
    %c0_i32 = arith.constant 0 : i32
    %c0_i32_0 = arith.constant 0 : i32
    %c0_i32_1 = arith.constant 0 : i32
    return %c0_i32, %c0_i32_0 : i32, i32
  }
  func.func @transform_2(%arg0: i32) -> (i32, i32) {
    %c0_i32 = arith.constant 0 : i32
    %c0_i32_0 = arith.constant 0 : i32
    %c0_i32_1 = arith.constant 0 : i32
    return %c0_i32, %c0_i32_0 : i32, i32
  }
  func.func @transform_3(%arg0: i32) -> (i32, i32) {
    %c0_i32 = arith.constant 0 : i32
    %c0_i32_0 = arith.constant 0 : i32
    %c0_i32_1 = arith.constant 0 : i32
    return %c0_i32, %c0_i32_0 : i32, i32
  }
  func.func @transform_4(%arg0: i32) -> (i32, i32) {
    %c0_i32 = arith.constant 0 : i32
    %c0_i32_0 = arith.constant 0 : i32
    %c0_i32_1 = arith.constant 0 : i32
    return %c0_i32, %c0_i32_0 : i32, i32
  }
  func.func @transform_5(%arg0: i32) -> (i32, i32) {
    %c0_i32 = arith.constant 0 : i32
    %c0_i32_0 = arith.constant 0 : i32
    %c0_i32_1 = arith.constant 0 : i32
    return %c0_i32, %c0_i32_0 : i32, i32
  }
  func.func @transform_6(%arg0: i32) -> (i32, i32) {
    %c0_i32 = arith.constant 0 : i32
    %c0_i32_0 = arith.constant 0 : i32
    %c0_i32_1 = arith.constant 0 : i32
    return %c0_i32, %c0_i32_0 : i32, i32
  }
  func.func @transform_7(%arg0: i32) -> (i32, i32) {
    %c0_i32 = arith.constant 0 : i32
    %c0_i32_0 = arith.constant 0 : i32
    %c0_i32_1 = arith.constant 0 : i32
    return %c0_i32, %c0_i32_0 : i32, i32
  }
  func.func @transform_8(%arg0: i32) -> (i32, i32) {
    %c0_i32 = arith.constant 0 : i32
    %c0_i32_0 = arith.constant 0 : i32
    %c0_i32_1 = arith.constant 0 : i32
    return %c0_i32, %c0_i32_0 : i32, i32
  }
  func.func @transform_9(%arg0: i32) -> (i32, i32) {
    %c0_i32 = arith.constant 0 : i32
    %c0_i32_0 = arith.constant 0 : i32
    return %arg0, %c0_i32 : i32, i32
  }
}

</mosaic_0001>

<llo_original>
// kernel: tpu_custom_call.1
$region0: #{tpu_custom_call.1}
  #allocation0 [shape = 'u32[]', space=smem, size = 0x4, offset = 0x4, fixed_abs, tag = 'smem constant byte address 0x4 - core index']
  #allocation1 [shape = 'u32[72,128]{1,0:T(1,128)}', space=vmem, size = 0x9000, scoped, tag = 'internal scratch']
  %s0 = inlined_call_operand.hbm [shape: f32[128,128], index: 0, kind: input, shape index: {}]
  %s1 = inlined_call_operand.hbm [shape: bf16[128,128], index: 1, kind: input, shape index: {}]
  %s2 = inlined_call_operand.vmem [shape: f32[1,128], index: 2, kind: input, shape index: {}]
  %s3 = inlined_call_operand.hbm [shape: bf16[128,128], index: 3, kind: input, shape index: {}]
  %s4 = inlined_call_operand.vmem [shape: f32[1,128], index: 4, kind: input, shape index: {}]
  %s5 = inlined_call_operand.hbm [shape: bf16[128,128], index: 5, kind: input, shape index: {}]
  %s6 = inlined_call_operand.vmem [shape: f32[1,128], index: 6, kind: input, shape index: {}]
  %s7 = inlined_call_operand.hbm [shape: bf16[128,128], index: 7, kind: input, shape index: {}]
  %s8 = inlined_call_operand.vmem [shape: f32[1,128], index: 8, kind: input, shape index: {}]
  %s9 = inlined_call_operand.hbm [shape: bf16[128,128], index: 9, kind: output, shape index: {}]
  %s10 = sld [smem:[#allocation0]]
  $region66: #{tpu_custom_call.1} parent=0
    _
  %s12 = ssub.s32 1, %s10
  %s13 = scalar_select 0, %s12, %s10
  $region1: #{tpu_custom_call.1} parent=0
    #allocation2 [shape = 'u8[65536]{0}', space=vmem, size = 0x10000, scoped, tag = 'input window, operand 0, single buffered']
    #allocation3 [shape = 's32[1]{0}', space=sflag, size = 0x4, scoped, tag = 'scoped memory for tpu_custom_call.1']
    #allocation4 [shape = 's32[1]{0}', space=sflag, size = 0x4, scoped, tag = 'scoped memory for tpu_custom_call.1']
    #allocation5 [shape = 'u8[32768]{0}', space=vmem, size = 0x8000, scoped, tag = 'input window, operand 1, single buffered']
    #allocation6 [shape = 's32[1]{0}', space=sflag, size = 0x4, scoped, tag = 'scoped memory for tpu_custom_call.1']
    #allocation7 [shape = 'u8[32768]{0}', space=vmem, size = 0x8000, scoped, tag = 'input window, operand 3, single buffered']
    #allocation8 [shape = 'u8[32768]{0}', space=vmem, size = 0x8000, scoped, tag = 'input window, operand 5, single buffered']
    #allocation9 [shape = 's32[1]{0}', space=sflag, size = 0x4, scoped, tag = 'scoped memory for tpu_custom_call.1']
    #allocation10 [shape = 'u8[32768]{0}', space=vmem, size = 0x8000, scoped, tag = 'input window, operand 7, single buffered']
    #allocation11 [shape = 'u8[32768]{0}', space=vmem, size = 0x8000, scoped, tag = 'output window, operand 0, single buffered']
    %14 = vsyncpa [#allocation3], 0
    %15 = vsyncpa [#allocation6], 0
    %16 = vsyncpa [#allocation9], 0
    %17 = vsyncpa [#allocation4], 0
    // Predicated region
    $region2: #{tpu_custom_call.1} parent=1 // pred_check
      _
    $region3: #{tpu_custom_call.1} parent=1 // pred_check_branch
      %19 = sbr.rel (0) target = $region5
    $region4: #{tpu_custom_call.1} parent=1 // pred_region
      %21 = vsyncadd [#allocation3], 0
      %s22 = sshll.u32 %s0, 4
      %s23 = int_to_ptr.hbm [resolvable:$true] %s22
      %s24 = sshll.u32 [#allocation2], 4
      %s25 = int_to_ptr.vmem [resolvable:$true] %s24
      %30 = dma.hbm_to_vmem [thread:$0]  %s23, 2048, %s25, [#allocation3], 128, 128, 8
    $region5: #{tpu_custom_call.1} parent=1 // pred_fallthru
      _
    // Predicated region
    $region6: #{tpu_custom_call.1} parent=1 // pred_check
      _
    $region7: #{tpu_custom_call.1} parent=1 // pred_check_branch
      %32 = sbr.rel (0) target = $region9
    $region8: #{tpu_custom_call.1} parent=1 // pred_region
      %34 = vsyncadd [#allocation6], 0
      %s35 = sshll.u32 %s1, 4
      %s36 = int_to_ptr.hbm [resolvable:$true] %s35
      %s37 = sshll.u32 [#allocation5], 4
      %s38 = int_to_ptr.vmem [resolvable:$true] %s37
      %43 = dma.hbm_to_vmem [thread:$0]  %s36, 1024, %s38, [#allocation6], 64, 64, 4
    $region9: #{tpu_custom_call.1} parent=1 // pred_fallthru
      _
    // Predicated region
    $region10: #{tpu_custom_call.1} parent=1 // pred_check
      _
    $region11: #{tpu_custom_call.1} parent=1 // pred_check_branch
      %45 = sbr.rel (0) target = $region13
    $region12: #{tpu_custom_call.1} parent=1 // pred_region
      _
    $region13: #{tpu_custom_call.1} parent=1 // pred_fallthru
      _
    // Predicated region
    $region14: #{tpu_custom_call.1} parent=1 // pred_check
      _
    $region15: #{tpu_custom_call.1} parent=1 // pred_check_branch
      %47 = sbr.rel (0) target = $region17
    $region16: #{tpu_custom_call.1} parent=1 // pred_region
      %49 = vsyncadd [#allocation6], 0
      %s50 = sshll.u32 %s3, 4
      %s51 = int_to_ptr.hbm [resolvable:$true] %s50
      %s52 = sshll.u32 [#allocation7], 4
      %s53 = int_to_ptr.vmem [resolvable:$true] %s52
      %58 = dma.hbm_to_vmem [thread:$0]  %s51, 1024, %s53, [#allocation6], 64, 64, 4
    $region17: #{tpu_custom_call.1} parent=1 // pred_fallthru
      _
    // Predicated region
    $region18: #{tpu_custom_call.1} parent=1 // pred_check
      _
    $region19: #{tpu_custom_call.1} parent=1 // pred_check_branch
      %60 = sbr.rel (0) target = $region21
    $region20: #{tpu_custom_call.1} parent=1 // pred_region
      _
    $region21: #{tpu_custom_call.1} parent=1 // pred_fallthru
      _
    // Predicated region
    $region22: #{tpu_custom_call.1} parent=1 // pred_check
      _
    $region23: #{tpu_custom_call.1} parent=1 // pred_check_branch
      %62 = sbr.rel (0) target = $region25
    $region24: #{tpu_custom_call.1} parent=1 // pred_region
      %64 = vsyncadd [#allocation9], 0
      %s65 = sshll.u32 %s5, 4
      %s66 = int_to_ptr.hbm [resolvable:$true] %s65
      %s67 = sshll.u32 [#allocation8], 4
      %s68 = int_to_ptr.vmem [resolvable:$true] %s67
      %73 = dma.hbm_to_vmem [thread:$0]  %s66, 1024, %s68, [#allocation9], 64, 64, 4
    $region25: #{tpu_custom_call.1} parent=1 // pred_fallthru
      _
    // Predicated region
    $region26: #{tpu_custom_call.1} parent=1 // pred_check
      _
    $region27: #{tpu_custom_call.1} parent=1 // pred_check_branch
      %75 = sbr.rel (0) target = $region29
    $region28: #{tpu_custom_call.1} parent=1 // pred_region
      _
    $region29: #{tpu_custom_call.1} parent=1 // pred_fallthru
      _
    // Predicated region
    $region30: #{tpu_custom_call.1} parent=1 // pred_check
      _
    $region31: #{tpu_custom_call.1} parent=1 // pred_check_branch
      %77 = sbr.rel (0) target = $region33
    $region32: #{tpu_custom_call.1} parent=1 // pred_region
      %79 = vsyncadd [#allocation9], 0
      %s80 = sshll.u32 %s7, 4
      %s81 = int_to_ptr.hbm [resolvable:$true] %s80
      %s82 = sshll.u32 [#allocation10], 4
      %s83 = int_to_ptr.vmem [resolvable:$true] %s82
      %88 = dma.hbm_to_vmem [thread:$0]  %s81, 1024, %s83, [#allocation9], 64, 64, 4
    $region33: #{tpu_custom_call.1} parent=1 // pred_fallthru
      _
    // Predicated region
    $region34: #{tpu_custom_call.1} parent=1 // pred_check
      _
    $region35: #{tpu_custom_call.1} parent=1 // pred_check_branch
      %90 = sbr.rel (0) target = $region37
    $region36: #{tpu_custom_call.1} parent=1 // pred_region
      _
    $region37: #{tpu_custom_call.1} parent=1 // pred_fallthru
      _
    // Predicated region
    $region38: #{tpu_custom_call.1} parent=1 // pred_check
      _
    $region39: #{tpu_custom_call.1} parent=1 // pred_check_branch
      %92 = sbr.rel (0) target = $region41
    $region40: #{tpu_custom_call.1} parent=1 // pred_region
      %94 = dma.done [#allocation3], 2048
    $region41: #{tpu_custom_call.1} parent=1 // pred_fallthru
      _
    // Predicated region
    $region42: #{tpu_custom_call.1} parent=1 // pred_check
      _
    $region43: #{tpu_custom_call.1} parent=1 // pred_check_branch
      %96 = sbr.rel (0) target = $region45
    $region44: #{tpu_custom_call.1} parent=1 // pred_region
      %98 = dma.done [#allocation6], 1024
    $region45: #{tpu_custom_call.1} parent=1 // pred_fallthru
      _
    // Predicated region
    $region46: #{tpu_custom_call.1} parent=1 // pred_check
      _
    $region47: #{tpu_custom_call.1} parent=1 // pred_check_branch
      %100 = sbr.rel (0) target = $region49
    $region48: #{tpu_custom_call.1} parent=1 // pred_region
      %102 = dma.done [#allocation6], 1024
    $region49: #{tpu_custom_call.1} parent=1 // pred_fallthru
      _
    // Predicated region
    $region50: #{tpu_custom_call.1} parent=1 // pred_check
      _
    $region51: #{tpu_custom_call.1} parent=1 // pred_check_branch
      %104 = sbr.rel (0) target = $region53
    $region52: #{tpu_custom_call.1} parent=1 // pred_region
      %106 = dma.done [#allocation9], 1024
    $region53: #{tpu_custom_call.1} parent=1 // pred_fallthru
      _
    // Predicated region
    $region54: #{tpu_custom_call.1} parent=1 // pred_check
      _
    $region55: #{tpu_custom_call.1} parent=1 // pred_check_branch
      %108 = sbr.rel (0) target = $region57
    $region56: #{tpu_custom_call.1} parent=1 // pred_region
      %110 = dma.done [#allocation9], 1024
    $region57: #{tpu_custom_call.1} parent=1 // pred_fallthru
      _
    %v111 = vld [vmem:[#allocation2] sm:$0xff]
    %v112 = vld [vmem:[#allocation2 + $0x8] sm:$0xff]
    %v113 = vld [vmem:[#allocation2 + $0x10] sm:$0xff]
    %v114 = vld [vmem:[#allocation2 + $0x18] sm:$0xff]
    %v115 = vld [vmem:[#allocation2 + $0x20] sm:$0xff]
    %v116 = vld [vmem:[#allocation2 + $0x28] sm:$0xff]
    %v117 = vld [vmem:[#allocation2 + $0x30] sm:$0xff]
    %v118 = vld [vmem:[#allocation2 + $0x38] sm:$0xff]
    %v119 = vld [vmem:[#allocation2 + $0x40] sm:$0xff]
    %v120 = vld [vmem:[#allocation2 + $0x48] sm:$0xff]
    %v121 = vld [vmem:[#allocation2 + $0x50] sm:$0xff]
    %v122 = vld [vmem:[#allocation2 + $0x58] sm:$0xff]
    %v123 = vld [vmem:[#allocation2 + $0x60] sm:$0xff]
    %v124 = vld [vmem:[#allocation2 + $0x68] sm:$0xff]
    %v125 = vld [vmem:[#allocation2 + $0x70] sm:$0xff]
    %v126 = vld [vmem:[#allocation2 + $0x78] sm:$0xff]
    %v127 = vmul.f32 %v111, %v111
    %v128 = vmul.f32 %v112, %v112
    %v129 = vmul.f32 %v113, %v113
    %v130 = vmul.f32 %v114, %v114
    %v131 = vmul.f32 %v115, %v115
    %v132 = vmul.f32 %v116, %v116
    %v133 = vmul.f32 %v117, %v117
    %v134 = vmul.f32 %v118, %v118
    %v135 = vmul.f32 %v119, %v119
    %v136 = vmul.f32 %v120, %v120
    %v137 = vmul.f32 %v121, %v121
    %v138 = vmul.f32 %v122, %v122
    %v139 = vmul.f32 %v123, %v123
    %v140 = vmul.f32 %v124, %v124
    %v141 = vmul.f32 %v125, %v125
    %v142 = vmul.f32 %v126, %v126
    %143 = vadd.xlane.f32.xlu0 %v127
    %v144 = vpop.xlane.xlu0 %143
    %145 = vadd.xlane.f32.xlu0 %v128
    %v146 = vpop.xlane.xlu0 %145
    %147 = vadd.xlane.f32.xlu0 %v129
    %v148 = vpop.xlane.xlu0 %147
    %149 = vadd.xlane.f32.xlu0 %v130
    %v150 = vpop.xlane.xlu0 %149
    %151 = vadd.xlane.f32.xlu0 %v131
    %v152 = vpop.xlane.xlu0 %151
    %153 = vadd.xlane.f32.xlu0 %v132
    %v154 = vpop.xlane.xlu0 %153
    %155 = vadd.xlane.f32.xlu0 %v133
    %v156 = vpop.xlane.xlu0 %155
    %157 = vadd.xlane.f32.xlu0 %v134
    %v158 = vpop.xlane.xlu0 %157
    %159 = vadd.xlane.f32.xlu0 %v135
    %v160 = vpop.xlane.xlu0 %159
    %161 = vadd.xlane.f32.xlu0 %v136
    %v162 = vpop.xlane.xlu0 %161
    %163 = vadd.xlane.f32.xlu0 %v137
    %v164 = vpop.xlane.xlu0 %163
    %165 = vadd.xlane.f32.xlu0 %v138
    %v166 = vpop.xlane.xlu0 %165
    %167 = vadd.xlane.f32.xlu0 %v139
    %v168 = vpop.xlane.xlu0 %167
    %169 = vadd.xlane.f32.xlu0 %v140
    %v170 = vpop.xlane.xlu0 %169
    %171 = vadd.xlane.f32.xlu0 %v141
    %v172 = vpop.xlane.xlu0 %171
    %173 = vadd.xlane.f32.xlu0 %v142
    %v174 = vpop.xlane.xlu0 %173
    %v175 = vmax.f32 %v144, 1e-24
    %v176 = vmax.f32 %v146, 1e-24
    %v177 = vmax.f32 %v148, 1e-24
    %v178 = vmax.f32 %v150, 1e-24
    %v179 = vmax.f32 %v152, 1e-24
    %v180 = vmax.f32 %v154, 1e-24
    %v181 = vmax.f32 %v156, 1e-24
    %v182 = vmax.f32 %v158, 1e-24
    %v183 = vmax.f32 %v160, 1e-24
    %v184 = vmax.f32 %v162, 1e-24
    %v185 = vmax.f32 %v164, 1e-24
    %v186 = vmax.f32 %v166, 1e-24
    %v187 = vmax.f32 %v168, 1e-24
    %v188 = vmax.f32 %v170, 1e-24
    %v189 = vmax.f32 %v172, 1e-24
    %v190 = vmax.f32 %v174, 1e-24
    %v191 = vrsqrt.pop %v175
    %v192 = vmul.f32 %v191, %v175
    %v193 = vmul.f32 %v192, %v191
    %v194 = vmul.f32 0.5, %v193
    %v195 = vsub.f32 1.5, %v194
    %v196 = vmul.f32 %v191, %v195
    %vm197 = vweird.f32 %v175
    %vm198 = vweird.f32 %v191
    %vm199 = vmor %vm197, %vm198
    %v200 = vsel %vm199, %v191, %v196
    %v201 = vrsqrt.pop %v176
    %v202 = vmul.f32 %v201, %v176
    %v203 = vmul.f32 %v202, %v201
    %v204 = vmul.f32 0.5, %v203
    %v205 = vsub.f32 1.5, %v204
    %v206 = vmul.f32 %v201, %v205
    %vm207 = vweird.f32 %v176
    %vm208 = vweird.f32 %v201
    %vm209 = vmor %vm207, %vm208
    %v210 = vsel %vm209, %v201, %v206
    %v211 = vrsqrt.pop %v177
    %v212 = vmul.f32 %v211, %v177
    %v213 = vmul.f32 %v212, %v211
    %v214 = vmul.f32 0.5, %v213
    %v215 = vsub.f32 1.5, %v214
    %v216 = vmul.f32 %v211, %v215
    %vm217 = vweird.f32 %v177
    %vm218 = vweird.f32 %v211
    %vm219 = vmor %vm217, %vm218
    %v220 = vsel %vm219, %v211, %v216
    %v221 = vrsqrt.pop %v178
    %v222 = vmul.f32 %v221, %v178
    %v223 = vmul.f32 %v222, %v221
    %v224 = vmul.f32 0.5, %v223
    %v225 = vsub.f32 1.5, %v224
    %v226 = vmul.f32 %v221, %v225
    %vm227 = vweird.f32 %v178
    %vm228 = vweird.f32 %v221
    %vm229 = vmor %vm227, %vm228
    %v230 = vsel %vm229, %v221, %v226
    %v231 = vrsqrt.pop %v179
    %v232 = vmul.f32 %v231, %v179
    %v233 = vmul.f32 %v232, %v231
    %v234 = vmul.f32 0.5, %v233
    %v235 = vsub.f32 1.5, %v234
    %v236 = vmul.f32 %v231, %v235
    %vm237 = vweird.f32 %v179
    %vm238 = vweird.f32 %v231
    %vm239 = vmor %vm237, %vm238
    %v240 = vsel %vm239, %v231, %v236
    %v241 = vrsqrt.pop %v180
    %v242 = vmul.f32 %v241, %v180
    %v243 = vmul.f32 %v242, %v241
    %v244 = vmul.f32 0.5, %v243
    %v245 = vsub.f32 1.5, %v244
    %v246 = vmul.f32 %v241, %v245
    %vm247 = vweird.f32 %v180
    %vm248 = vweird.f32 %v241
    %vm249 = vmor %vm247, %vm248
    %v250 = vsel %vm249, %v241, %v246
    %v251 = vrsqrt.pop %v181
    %v252 = vmul.f32 %v251, %v181
    %v253 = vmul.f32 %v252, %v251
    %v254 = vmul.f32 0.5, %v253
    %v255 = vsub.f32 1.5, %v254
    %v256 = vmul.f32 %v251, %v255
    %vm257 = vweird.f32 %v181
    %vm258 = vweird.f32 %v251
    %vm259 = vmor %vm257, %vm258
    %v260 = vsel %vm259, %v251, %v256
    %v261 = vrsqrt.pop %v182
    %v262 = vmul.f32 %v261, %v182
    %v263 = vmul.f32 %v262, %v261
    %v264 = vmul.f32 0.5, %v263
    %v265 = vsub.f32 1.5, %v264
    %v266 = vmul.f32 %v261, %v265
    %vm267 = vweird.f32 %v182
    %vm268 = vweird.f32 %v261
    %vm269 = vmor %vm267, %vm268
    %v270 = vsel %vm269, %v261, %v266
    %v271 = vrsqrt.pop %v183
    %v272 = vmul.f32 %v271, %v183
    %v273 = vmul.f32 %v272, %v271
    %v274 = vmul.f32 0.5, %v273
    %v275 = vsub.f32 1.5, %v274
    %v276 = vmul.f32 %v271, %v275
    %vm277 = vweird.f32 %v183
    %vm278 = vweird.f32 %v271
    %vm279 = vmor %vm277, %vm278
    %v280 = vsel %vm279, %v271, %v276
    %v281 = vrsqrt.pop %v184
    %v282 = vmul.f32 %v281, %v184
    %v283 = vmul.f32 %v282, %v281
    %v284 = vmul.f32 0.5, %v283
    %v285 = vsub.f32 1.5, %v284
    %v286 = vmul.f32 %v281, %v285
    %vm287 = vweird.f32 %v184
    %vm288 = vweird.f32 %v281
    %vm289 = vmor %vm287, %vm288
    %v290 = vsel %vm289, %v281, %v286
    %v291 = vrsqrt.pop %v185
    %v292 = vmul.f32 %v291, %v185
    %v293 = vmul.f32 %v292, %v291
    %v294 = vmul.f32 0.5, %v293
    %v295 = vsub.f32 1.5, %v294
    %v296 = vmul.f32 %v291, %v295
    %vm297 = vweird.f32 %v185
    %vm298 = vweird.f32 %v291
    %vm299 = vmor %vm297, %vm298
    %v300 = vsel %vm299, %v291, %v296
    %v301 = vrsqrt.pop %v186
    %v302 = vmul.f32 %v301, %v186
    %v303 = vmul.f32 %v302, %v301
    %v304 = vmul.f32 0.5, %v303
    %v305 = vsub.f32 1.5, %v304
    %v306 = vmul.f32 %v301, %v305
    %vm307 = vweird.f32 %v186
    %vm308 = vweird.f32 %v301
    %vm309 = vmor %vm307, %vm308
    %v310 = vsel %vm309, %v301, %v306
    %v311 = vrsqrt.pop %v187
    %v312 = vmul.f32 %v311, %v187
    %v313 = vmul.f32 %v312, %v311
    %v314 = vmul.f32 0.5, %v313
    %v315 = vsub.f32 1.5, %v314
    %v316 = vmul.f32 %v311, %v315
    %vm317 = vweird.f32 %v187
    %vm318 = vweird.f32 %v311
    %vm319 = vmor %vm317, %vm318
    %v320 = vsel %vm319, %v311, %v316
    %v321 = vrsqrt.pop %v188
    %v322 = vmul.f32 %v321, %v188
    %v323 = vmul.f32 %v322, %v321
    %v324 = vmul.f32 0.5, %v323
    %v325 = vsub.f32 1.5, %v324
    %v326 = vmul.f32 %v321, %v325
    %vm327 = vweird.f32 %v188
    %vm328 = vweird.f32 %v321
    %vm329 = vmor %vm327, %vm328
    %v330 = vsel %vm329, %v321, %v326
    %v331 = vrsqrt.pop %v189
    %v332 = vmul.f32 %v331, %v189
    %v333 = vmul.f32 %v332, %v331
    %v334 = vmul.f32 0.5, %v333
    %v335 = vsub.f32 1.5, %v334
    %v336 = vmul.f32 %v331, %v335
    %vm337 = vweird.f32 %v189
    %vm338 = vweird.f32 %v331
    %vm339 = vmor %vm337, %vm338
    %v340 = vsel %vm339, %v331, %v336
    %v341 = vrsqrt.pop %v190
    %v342 = vmul.f32 %v341, %v190
    %v343 = vmul.f32 %v342, %v341
    %v344 = vmul.f32 0.5, %v343
    %v345 = vsub.f32 1.5, %v344
    %v346 = vmul.f32 %v341, %v345
    %vm347 = vweird.f32 %v190
    %vm348 = vweird.f32 %v341
    %vm349 = vmor %vm347, %vm348
    %v350 = vsel %vm349, %v341, %v346
    %v351 = vpack.c.bf16 %v112, %v111
    %v352 = vpack.c.bf16 %v114, %v113
    %v353 = vpack.c.bf16 %v116, %v115
    %v354 = vpack.c.bf16 %v118, %v117
    %v355 = vpack.c.bf16 %v120, %v119
    %v356 = vpack.c.bf16 %v122, %v121
    %v357 = vpack.c.bf16 %v124, %v123
    %v358 = vpack.c.bf16 %v126, %v125
    %v359 = vld [vmem:[#allocation5] sm:$0xf]
    %v360 = vld [vmem:[#allocation5 + $0x4] sm:$0xf]
    %v361 = vld [vmem:[#allocation5 + $0x8] sm:$0xf]
    %v362 = vld [vmem:[#allocation5 + $0xc] sm:$0xf]
    %v363 = vld [vmem:[#allocation5 + $0x10] sm:$0xf]
    %v364 = vld [vmem:[#allocation5 + $0x14] sm:$0xf]
    %v365 = vld [vmem:[#allocation5 + $0x18] sm:$0xf]
    %v366 = vld [vmem:[#allocation5 + $0x1c] sm:$0xf]
    %v367 = vld [vmem:[#allocation5 + $0x20] sm:$0xf]
    %v368 = vld [vmem:[#allocation5 + $0x24] sm:$0xf]
    %v369 = vld [vmem:[#allocation5 + $0x28] sm:$0xf]
    %v370 = vld [vmem:[#allocation5 + $0x2c] sm:$0xf]
    %v371 = vld [vmem:[#allocation5 + $0x30] sm:$0xf]
    %v372 = vld [vmem:[#allocation5 + $0x34] sm:$0xf]
    %v373 = vld [vmem:[#allocation5 + $0x38] sm:$0xf]
    %v374 = vld [vmem:[#allocation5 + $0x3c] sm:$0xf]
    %v391 = vunpack.c.l.b16 %v359
    %v392 = vunpack.c.l.b16 %v360
    %v393 = vunpack.c.l.b16 %v361
    %v394 = vunpack.c.l.b16 %v362
    %v395 = vunpack.c.l.b16 %v363
    %v396 = vunpack.c.l.b16 %v364
    %v397 = vunpack.c.l.b16 %v365
    %v398 = vunpack.c.l.b16 %v366
    %v399 = vunpack.c.l.b16 %v367
    %v400 = vunpack.c.l.b16 %v368
    %v401 = vunpack.c.l.b16 %v369
    %v402 = vunpack.c.l.b16 %v370
    %v403 = vunpack.c.l.b16 %v371
    %v404 = vunpack.c.l.b16 %v372
    %v405 = vunpack.c.l.b16 %v373
    %v406 = vunpack.c.l.b16 %v374
    %v407 = vpack.c.b16 %v392, %v391
    %v408 = vpack.c.b16 %v394, %v393
    %v409 = vpack.c.b16 %v396, %v395
    %v410 = vpack.c.b16 %v398, %v397
    %v411 = vpack.c.b16 %v400, %v399
    %v412 = vpack.c.b16 %v402, %v401
    %v413 = vpack.c.b16 %v404, %v403
    %v414 = vpack.c.b16 %v406, %v405
    %423 = vmatpush.bf16.msra.mxu0 %v414
    %424 = vmatpush.bf16.msra.mxu0 %v413
    %425 = vmatpush.bf16.msra.mxu0 %v412
    %426 = vmatpush.bf16.msra.mxu0 %v411
    %427 = vmatpush.bf16.msra.mxu0 %v410
    %428 = vmatpush.bf16.msra.mxu0 %v409
    %429 = vmatpush.bf16.msra.mxu0 %v408
    %430 = vmatpush.bf16.msra.mxu0 %v407
    %431 = vmatmul.bf16.gmra.mxu0 %v351
    %v432 = vpop.f32.mrf.mxu0
    %v433 = vadd.f32 0.0, %v432
    %v434 = vpop.f32.mrf.mxu0
    %v435 = vadd.f32 0.0, %v434
    %436 = vmatmul.bf16.gmra.mxu0 %v352
    %v437 = vpop.f32.mrf.mxu0
    %v438 = vadd.f32 0.0, %v437
    %v439 = vpop.f32.mrf.mxu0
    %v440 = vadd.f32 0.0, %v439
    %441 = vmatmul.bf16.gmra.mxu0 %v353
    %v442 = vpop.f32.mrf.mxu0
    %v443 = vadd.f32 0.0, %v442
    %v444 = vpop.f32.mrf.mxu0
    %v445 = vadd.f32 0.0, %v444
    %446 = vmatmul.bf16.gmra.mxu0 %v354
    %v447 = vpop.f32.mrf.mxu0
    %v448 = vadd.f32 0.0, %v447
    %v449 = vpop.f32.mrf.mxu0
    %v450 = vadd.f32 0.0, %v449
    %451 = vmatmul.bf16.gmra.mxu0 %v355
    %v452 = vpop.f32.mrf.mxu0
    %v453 = vadd.f32 0.0, %v452
    %v454 = vpop.f32.mrf.mxu0
    %v455 = vadd.f32 0.0, %v454
    %456 = vmatmul.bf16.gmra.mxu0 %v356
    %v457 = vpop.f32.mrf.mxu0
    %v458 = vadd.f32 0.0, %v457
    %v459 = vpop.f32.mrf.mxu0
    %v460 = vadd.f32 0.0, %v459
    %461 = vmatmul.bf16.gmra.mxu0 %v357
    %v462 = vpop.f32.mrf.mxu0
    %v463 = vadd.f32 0.0, %v462
    %v464 = vpop.f32.mrf.mxu0
    %v465 = vadd.f32 0.0, %v464
    %466 = vmatmul.bf16.gmra.mxu0 %v358
    %v467 = vpop.f32.mrf.mxu0
    %v468 = vadd.f32 0.0, %v467
    %v469 = vpop.f32.mrf.mxu0
    %v470 = vadd.f32 0.0, %v469
    %471 = vdwg.mxu0
    %v472 = vmul.f32 %v433, %v200
    %v473 = vmul.f32 %v435, %v210
    %v474 = vmul.f32 %v438, %v220
    %v475 = vmul.f32 %v440, %v230
    %v476 = vmul.f32 %v443, %v240
    %v477 = vmul.f32 %v445, %v250
    %v478 = vmul.f32 %v448, %v260
    %v479 = vmul.f32 %v450, %v270
    %v480 = vmul.f32 %v453, %v280
    %v481 = vmul.f32 %v455, %v290
    %v482 = vmul.f32 %v458, %v300
    %v483 = vmul.f32 %v460, %v310
    %v484 = vmul.f32 %v463, %v320
    %v485 = vmul.f32 %v465, %v330
    %v486 = vmul.f32 %v468, %v340
    %v487 = vmul.f32 %v470, %v350
    %v488 = vld [vmem:[%s2] sm:$0x1]
    %v490 = vperm.slane %v488, 0
    %v492 = vadd.f32 %v472, %v490
    %v493 = vadd.f32 %v473, %v490
    %v494 = vadd.f32 %v474, %v490
    %v495 = vadd.f32 %v475, %v490
    %v496 = vadd.f32 %v476, %v490
    %v497 = vadd.f32 %v477, %v490
    %v498 = vadd.f32 %v478, %v490
    %v499 = vadd.f32 %v479, %v490
    %v500 = vadd.f32 %v480, %v490
    %v501 = vadd.f32 %v481, %v490
    %v502 = vadd.f32 %v482, %v490
    %v503 = vadd.f32 %v483, %v490
    %v504 = vadd.f32 %v484, %v490
    %v505 = vadd.f32 %v485, %v490
    %v506 = vadd.f32 %v486, %v490
    %v507 = vadd.f32 %v487, %v490
    %v508 = vtanh.pop %v492
    %v509 = vtanh.pop %v493
    %v510 = vtanh.pop %v494
    %v511 = vtanh.pop %v495
    %v512 = vtanh.pop %v496
    %v513 = vtanh.pop %v497
    %v514 = vtanh.pop %v498
    %v515 = vtanh.pop %v499
    %v516 = vtanh.pop %v500
    %v517 = vtanh.pop %v501
    %v518 = vtanh.pop %v502
    %v519 = vtanh.pop %v503
    %v520 = vtanh.pop %v504
    %v521 = vtanh.pop %v505
    %v522 = vtanh.pop %v506
    %v523 = vtanh.pop %v507
    %v524 = vpack.c.bf16 %v509, %v508
    %v525 = vpack.c.bf16 %v511, %v510
    %v526 = vpack.c.bf16 %v513, %v512
    %v527 = vpack.c.bf16 %v515, %v514
    %v528 = vpack.c.bf16 %v517, %v516
    %v529 = vpack.c.bf16 %v519, %v518
    %v530 = vpack.c.bf16 %v521, %v520
    %v531 = vpack.c.bf16 %v523, %v522
    %v532 = vld [vmem:[#allocation7] sm:$0xf]
    %v533 = vld [vmem:[#allocation7 + $0x4] sm:$0xf]
    %v534 = vld [vmem:[#allocation7 + $0x8] sm:$0xf]
    %v535 = vld [vmem:[#allocation7 + $0xc] sm:$0xf]
    %v536 = vld [vmem:[#allocation7 + $0x10] sm:$0xf]
    %v537 = vld [vmem:[#allocation7 + $0x14] sm:$0xf]
    %v538 = vld [vmem:[#allocation7 + $0x18] sm:$0xf]
    %v539 = vld [vmem:[#allocation7 + $0x1c] sm:$0xf]
    %v540 = vld [vmem:[#allocation7 + $0x20] sm:$0xf]
    %v541 = vld [vmem:[#allocation7 + $0x24] sm:$0xf]
    %v542 = vld [vmem:[#allocation7 + $0x28] sm:$0xf]
    %v543 = vld [vmem:[#allocation7 + $0x2c] sm:$0xf]
    %v544 = vld [vmem:[#allocation7 + $0x30] sm:$0xf]
    %v545 = vld [vmem:[#allocation7 + $0x34] sm:$0xf]
    %v546 = vld [vmem:[#allocation7 + $0x38] sm:$0xf]
    %v547 = vld [vmem:[#allocation7 + $0x3c] sm:$0xf]
    %v548 = vld [vmem:[%s4] sm:$0x1]
    %v550 = vperm.slane %v548, 0
    %v568 = vunpack.c.l.b16 %v532
    %v569 = vunpack.c.l.b16 %v533
    %v570 = vunpack.c.l.b16 %v534
    %v571 = vunpack.c.l.b16 %v535
    %v572 = vunpack.c.l.b16 %v536
    %v573 = vunpack.c.l.b16 %v537
    %v574 = vunpack.c.l.b16 %v538
    %v575 = vunpack.c.l.b16 %v539
    %v576 = vunpack.c.l.b16 %v540
    %v577 = vunpack.c.l.b16 %v541
    %v578 = vunpack.c.l.b16 %v542
    %v579 = vunpack.c.l.b16 %v543
    %v580 = vunpack.c.l.b16 %v544
    %v581 = vunpack.c.l.b16 %v545
    %v582 = vunpack.c.l.b16 %v546
    %v583 = vunpack.c.l.b16 %v547
    %v584 = vpack.c.b16 %v569, %v568
    %v585 = vpack.c.b16 %v571, %v570
    %v586 = vpack.c.b16 %v573, %v572
    %v587 = vpack.c.b16 %v575, %v574
    %v588 = vpack.c.b16 %v577, %v576
    %v589 = vpack.c.b16 %v579, %v578
    %v590 = vpack.c.b16 %v581, %v580
    %v591 = vpack.c.b16 %v583, %v582
    %600 = vmatpush.bf16.msra.mxu0 %v591
    %601 = vmatpush.bf16.msra.mxu0 %v590
    %602 = vmatpush.bf16.msra.mxu0 %v589
    %603 = vmatpush.bf16.msra.mxu0 %v588
    %604 = vmatpush.bf16.msra.mxu0 %v587
    %605 = vmatpush.bf16.msra.mxu0 %v586
    %606 = vmatpush.bf16.msra.mxu0 %v585
    %607 = vmatpush.bf16.msra.mxu0 %v584
    %608 = vmatmul.bf16.gmra.mxu0 %v524
    %v609 = vpop.f32.mrf.mxu0
    %v610 = vadd.f32 %v550, %v609
    %v611 = vpop.f32.mrf.mxu0
    %v612 = vadd.f32 %v550, %v611
    %613 = vmatmul.bf16.gmra.mxu0 %v525
    %v614 = vpop.f32.mrf.mxu0
    %v615 = vadd.f32 %v550, %v614
    %v616 = vpop.f32.mrf.mxu0
    %v617 = vadd.f32 %v550, %v616
    %618 = vmatmul.bf16.gmra.mxu0 %v526
    %v619 = vpop.f32.mrf.mxu0
    %v620 = vadd.f32 %v550, %v619
    %v621 = vpop.f32.mrf.mxu0
    %v622 = vadd.f32 %v550, %v621
    %623 = vmatmul.bf16.gmra.mxu0 %v527
    %v624 = vpop.f32.mrf.mxu0
    %v625 = vadd.f32 %v550, %v624
    %v626 = vpop.f32.mrf.mxu0
    %v627 = vadd.f32 %v550, %v626
    %628 = vmatmul.bf16.gmra.mxu0 %v528
    %v629 = vpop.f32.mrf.mxu0
    %v630 = vadd.f32 %v550, %v629
    %v631 = vpop.f32.mrf.mxu0
    %v632 = vadd.f32 %v550, %v631
    %633 = vmatmul.bf16.gmra.mxu0 %v529
    %v634 = vpop.f32.mrf.mxu0
    %v635 = vadd.f32 %v550, %v634
    %v636 = vpop.f32.mrf.mxu0
    %v637 = vadd.f32 %v550, %v636
    %638 = vmatmul.bf16.gmra.mxu0 %v530
    %v639 = vpop.f32.mrf.mxu0
    %v640 = vadd.f32 %v550, %v639
    %v641 = vpop.f32.mrf.mxu0
    %v642 = vadd.f32 %v550, %v641
    %643 = vmatmul.bf16.gmra.mxu0 %v531
    %v644 = vpop.f32.mrf.mxu0
    %v645 = vadd.f32 %v550, %v644
    %v646 = vpop.f32.mrf.mxu0
    %v647 = vadd.f32 %v550, %v646
    %648 = vdwg.mxu0
    %v649 = vpack.c.bf16 %v612, %v610
    %v650 = vpack.c.bf16 %v617, %v615
    %v651 = vpack.c.bf16 %v622, %v620
    %v652 = vpack.c.bf16 %v627, %v625
    %v653 = vpack.c.bf16 %v632, %v630
    %v654 = vpack.c.bf16 %v637, %v635
    %v655 = vpack.c.bf16 %v642, %v640
    %v656 = vpack.c.bf16 %v647, %v645
    %v657 = vld [vmem:[#allocation8] sm:$0xf]
    %v658 = vld [vmem:[#allocation8 + $0x4] sm:$0xf]
    %v659 = vld [vmem:[#allocation8 + $0x8] sm:$0xf]
    %v660 = vld [vmem:[#allocation8 + $0xc] sm:$0xf]
    %v661 = vld [vmem:[#allocation8 + $0x10] sm:$0xf]
    %v662 = vld [vmem:[#allocation8 + $0x14] sm:$0xf]
    %v663 = vld [vmem:[#allocation8 + $0x18] sm:$0xf]
    %v664 = vld [vmem:[#allocation8 + $0x1c] sm:$0xf]
    %v665 = vld [vmem:[#allocation8 + $0x20] sm:$0xf]
    %v666 = vld [vmem:[#allocation8 + $0x24] sm:$0xf]
    %v667 = vld [vmem:[#allocation8 + $0x28] sm:$0xf]
    %v668 = vld [vmem:[#allocation8 + $0x2c] sm:$0xf]
    %v669 = vld [vmem:[#allocation8 + $0x30] sm:$0xf]
    %v670 = vld [vmem:[#allocation8 + $0x34] sm:$0xf]
    %v671 = vld [vmem:[#allocation8 + $0x38] sm:$0xf]
    %v672 = vld [vmem:[#allocation8 + $0x3c] sm:$0xf]
    %v673 = vld [vmem:[%s6] sm:$0x1]
    %v675 = vperm.slane %v673, 0
    %v693 = vunpack.c.l.b16 %v657
    %v694 = vunpack.c.l.b16 %v658
    %v695 = vunpack.c.l.b16 %v659
    %v696 = vunpack.c.l.b16 %v660
    %v697 = vunpack.c.l.b16 %v661
    %v698 = vunpack.c.l.b16 %v662
    %v699 = vunpack.c.l.b16 %v663
    %v700 = vunpack.c.l.b16 %v664
    %v701 = vunpack.c.l.b16 %v665
    %v702 = vunpack.c.l.b16 %v666
    %v703 = vunpack.c.l.b16 %v667
    %v704 = vunpack.c.l.b16 %v668
    %v705 = vunpack.c.l.b16 %v669
    %v706 = vunpack.c.l.b16 %v670
    %v707 = vunpack.c.l.b16 %v671
    %v708 = vunpack.c.l.b16 %v672
    %v709 = vpack.c.b16 %v694, %v693
    %v710 = vpack.c.b16 %v696, %v695
    %v711 = vpack.c.b16 %v698, %v697
    %v712 = vpack.c.b16 %v700, %v699
    %v713 = vpack.c.b16 %v702, %v701
    %v714 = vpack.c.b16 %v704, %v703
    %v715 = vpack.c.b16 %v706, %v705
    %v716 = vpack.c.b16 %v708, %v707
    %725 = vmatpush.bf16.msra.mxu0 %v716
    %726 = vmatpush.bf16.msra.mxu0 %v715
    %727 = vmatpush.bf16.msra.mxu0 %v714
    %728 = vmatpush.bf16.msra.mxu0 %v713
    %729 = vmatpush.bf16.msra.mxu0 %v712
    %730 = vmatpush.bf16.msra.mxu0 %v711
    %731 = vmatpush.bf16.msra.mxu0 %v710
    %732 = vmatpush.bf16.msra.mxu0 %v709
    %733 = vmatmul.bf16.gmra.mxu0 %v649
    %v734 = vpop.f32.mrf.mxu0
    %v735 = vadd.f32 %v675, %v734
    %v736 = vpop.f32.mrf.mxu0
    %v737 = vadd.f32 %v675, %v736
    %738 = vmatmul.bf16.gmra.mxu0 %v650
    %v739 = vpop.f32.mrf.mxu0
    %v740 = vadd.f32 %v675, %v739
    %v741 = vpop.f32.mrf.mxu0
    %v742 = vadd.f32 %v675, %v741
    %743 = vmatmul.bf16.gmra.mxu0 %v651
    %v744 = vpop.f32.mrf.mxu0
    %v745 = vadd.f32 %v675, %v744
    %v746 = vpop.f32.mrf.mxu0
    %v747 = vadd.f32 %v675, %v746
    %748 = vmatmul.bf16.gmra.mxu0 %v652
    %v749 = vpop.f32.mrf.mxu0
    %v750 = vadd.f32 %v675, %v749
    %v751 = vpop.f32.mrf.mxu0
    %v752 = vadd.f32 %v675, %v751
    %753 = vmatmul.bf16.gmra.mxu0 %v653
    %v754 = vpop.f32.mrf.mxu0
    %v755 = vadd.f32 %v675, %v754
    %v756 = vpop.f32.mrf.mxu0
    %v757 = vadd.f32 %v675, %v756
    %758 = vmatmul.bf16.gmra.mxu0 %v654
    %v759 = vpop.f32.mrf.mxu0
    %v760 = vadd.f32 %v675, %v759
    %v761 = vpop.f32.mrf.mxu0
    %v762 = vadd.f32 %v675, %v761
    %763 = vmatmul.bf16.gmra.mxu0 %v655
    %v764 = vpop.f32.mrf.mxu0
    %v765 = vadd.f32 %v675, %v764
    %v766 = vpop.f32.mrf.mxu0
    %v767 = vadd.f32 %v675, %v766
    %768 = vmatmul.bf16.gmra.mxu0 %v656
    %v769 = vpop.f32.mrf.mxu0
    %v770 = vadd.f32 %v675, %v769
    %v771 = vpop.f32.mrf.mxu0
    %v772 = vadd.f32 %v675, %v771
    %773 = vdwg.mxu0
    %v774 = vtanh.pop %v735
    %v775 = vtanh.pop %v737
    %v776 = vtanh.pop %v740
    %v777 = vtanh.pop %v742
    %v778 = vtanh.pop %v745
    %v779 = vtanh.pop %v747
    %v780 = vtanh.pop %v750
    %v781 = vtanh.pop %v752
    %v782 = vtanh.pop %v755
    %v783 = vtanh.pop %v757
    %v784 = vtanh.pop %v760
    %v785 = vtanh.pop %v762
    %v786 = vtanh.pop %v765
    %v787 = vtanh.pop %v767
    %v788 = vtanh.pop %v770
    %v789 = vtanh.pop %v772
    %v790 = vpack.c.bf16 %v775, %v774
    %v791 = vpack.c.bf16 %v777, %v776
    %v792 = vpack.c.bf16 %v779, %v778
    %v793 = vpack.c.bf16 %v781, %v780
    %v794 = vpack.c.bf16 %v783, %v782
    %v795 = vpack.c.bf16 %v785, %v784
    %v796 = vpack.c.bf16 %v787, %v786
    %v797 = vpack.c.bf16 %v789, %v788
    %v798 = vld [vmem:[#allocation10] sm:$0xf]
    %v799 = vld [vmem:[#allocation10 + $0x4] sm:$0xf]
    %v800 = vld [vmem:[#allocation10 + $0x8] sm:$0xf]
    %v801 = vld [vmem:[#allocation10 + $0xc] sm:$0xf]
    %v802 = vld [vmem:[#allocation10 + $0x10] sm:$0xf]
    %v803 = vld [vmem:[#allocation10 + $0x14] sm:$0xf]
    %v804 = vld [vmem:[#allocation10 + $0x18] sm:$0xf]
    %v805 = vld [vmem:[#allocation10 + $0x1c] sm:$0xf]
    %v806 = vld [vmem:[#allocation10 + $0x20] sm:$0xf]
    %v807 = vld [vmem:[#allocation10 + $0x24] sm:$0xf]
    %v808 = vld [vmem:[#allocation10 + $0x28] sm:$0xf]
    %v809 = vld [vmem:[#allocation10 + $0x2c] sm:$0xf]
    %v810 = vld [vmem:[#allocation10 + $0x30] sm:$0xf]
    %v811 = vld [vmem:[#allocation10 + $0x34] sm:$0xf]
    %v812 = vld [vmem:[#allocation10 + $0x38] sm:$0xf]
    %v813 = vld [vmem:[#allocation10 + $0x3c] sm:$0xf]
    %v814 = vld [vmem:[%s8] sm:$0x1]
    %v816 = vperm.slane %v814, 0
    %v834 = vunpack.c.l.b16 %v798
    %v835 = vunpack.c.l.b16 %v799
    %v836 = vunpack.c.l.b16 %v800
    %v837 = vunpack.c.l.b16 %v801
    %v838 = vunpack.c.l.b16 %v802
    %v839 = vunpack.c.l.b16 %v803
    %v840 = vunpack.c.l.b16 %v804
    %v841 = vunpack.c.l.b16 %v805
    %v842 = vunpack.c.l.b16 %v806
    %v843 = vunpack.c.l.b16 %v807
    %v844 = vunpack.c.l.b16 %v808
    %v845 = vunpack.c.l.b16 %v809
    %v846 = vunpack.c.l.b16 %v810
    %v847 = vunpack.c.l.b16 %v811
    %v848 = vunpack.c.l.b16 %v812
    %v849 = vunpack.c.l.b16 %v813
    %v850 = vpack.c.b16 %v835, %v834
    %v851 = vpack.c.b16 %v837, %v836
    %v852 = vpack.c.b16 %v839, %v838
    %v853 = vpack.c.b16 %v841, %v840
    %v854 = vpack.c.b16 %v843, %v842
    %v855 = vpack.c.b16 %v845, %v844
    %v856 = vpack.c.b16 %v847, %v846
    %v857 = vpack.c.b16 %v849, %v848
    %866 = vmatpush.bf16.msra.mxu0 %v857
    %867 = vmatpush.bf16.msra.mxu0 %v856
    %868 = vmatpush.bf16.msra.mxu0 %v855
    %869 = vmatpush.bf16.msra.mxu0 %v854
    %870 = vmatpush.bf16.msra.mxu0 %v853
    %871 = vmatpush.bf16.msra.mxu0 %v852
    %872 = vmatpush.bf16.msra.mxu0 %v851
    %873 = vmatpush.bf16.msra.mxu0 %v850
    %874 = vmatmul.bf16.gmra.mxu0 %v790
    %v875 = vpop.f32.mrf.mxu0
    %v876 = vadd.f32 %v816, %v875
    %v877 = vpop.f32.mrf.mxu0
    %v878 = vadd.f32 %v816, %v877
    %879 = vmatmul.bf16.gmra.mxu0 %v791
    %v880 = vpop.f32.mrf.mxu0
    %v881 = vadd.f32 %v816, %v880
    %v882 = vpop.f32.mrf.mxu0
    %v883 = vadd.f32 %v816, %v882
    %884 = vmatmul.bf16.gmra.mxu0 %v792
    %v885 = vpop.f32.mrf.mxu0
    %v886 = vadd.f32 %v816, %v885
    %v887 = vpop.f32.mrf.mxu0
    %v888 = vadd.f32 %v816, %v887
    %889 = vmatmul.bf16.gmra.mxu0 %v793
    %v890 = vpop.f32.mrf.mxu0
    %v891 = vadd.f32 %v816, %v890
    %v892 = vpop.f32.mrf.mxu0
    %v893 = vadd.f32 %v816, %v892
    %894 = vmatmul.bf16.gmra.mxu0 %v794
    %v895 = vpop.f32.mrf.mxu0
    %v896 = vadd.f32 %v816, %v895
    %v897 = vpop.f32.mrf.mxu0
    %v898 = vadd.f32 %v816, %v897
    %899 = vmatmul.bf16.gmra.mxu0 %v795
    %v900 = vpop.f32.mrf.mxu0
    %v901 = vadd.f32 %v816, %v900
    %v902 = vpop.f32.mrf.mxu0
    %v903 = vadd.f32 %v816, %v902
    %904 = vmatmul.bf16.gmra.mxu0 %v796
    %v905 = vpop.f32.mrf.mxu0
    %v906 = vadd.f32 %v816, %v905
    %v907 = vpop.f32.mrf.mxu0
    %v908 = vadd.f32 %v816, %v907
    %909 = vmatmul.bf16.gmra.mxu0 %v797
    %v910 = vpop.f32.mrf.mxu0
    %v911 = vadd.f32 %v816, %v910
    %v912 = vpop.f32.mrf.mxu0
    %v913 = vadd.f32 %v816, %v912
    %914 = vdwg.mxu0
    %v915 = vpack.c.bf16 %v876, %v876
    %v916 = vpack.c.bf16 %v878, %v878
    %v917 = vpack.c.bf16 %v881, %v881
    %v918 = vpack.c.bf16 %v883, %v883
    %v919 = vpack.c.bf16 %v886, %v886
    %v920 = vpack.c.bf16 %v888, %v888
    %v921 = vpack.c.bf16 %v891, %v891
    %v922 = vpack.c.bf16 %v893, %v893
    %v923 = vpack.c.bf16 %v896, %v896
    %v924 = vpack.c.bf16 %v898, %v898
    %v925 = vpack.c.bf16 %v901, %v901
    %v926 = vpack.c.bf16 %v903, %v903
    %v927 = vpack.c.bf16 %v906, %v906
    %v928 = vpack.c.bf16 %v908, %v908
    %v929 = vpack.c.bf16 %v911, %v911
    %v930 = vpack.c.bf16 %v913, %v913
    %931 = vst [vmem:[#allocation11] sm:$0xf] %v915
    %932 = vst [vmem:[#allocation11 + $0x4] sm:$0xf] %v916
    %933 = vst [vmem:[#allocation11 + $0x8] sm:$0xf] %v917
    %934 = vst [vmem:[#allocation11 + $0xc] sm:$0xf] %v918
    %935 = vst [vmem:[#allocation11 + $0x10] sm:$0xf] %v919
    %936 = vst [vmem:[#allocation11 + $0x14] sm:$0xf] %v920
    %937 = vst [vmem:[#allocation11 + $0x18] sm:$0xf] %v921
    %938 = vst [vmem:[#allocation11 + $0x1c] sm:$0xf] %v922
    %939 = vst [vmem:[#allocation11 + $0x20] sm:$0xf] %v923
    %940 = vst [vmem:[#allocation11 + $0x24] sm:$0xf] %v924
    %941 = vst [vmem:[#allocation11 + $0x28] sm:$0xf] %v925
    %942 = vst [vmem:[#allocation11 + $0x2c] sm:$0xf] %v926
    %943 = vst [vmem:[#allocation11 + $0x30] sm:$0xf] %v927
    %944 = vst [vmem:[#allocation11 + $0x34] sm:$0xf] %v928
    %945 = vst [vmem:[#allocation11 + $0x38] sm:$0xf] %v929
    %946 = vst [vmem:[#allocation11 + $0x3c] sm:$0xf] %v930
    // Predicated region
    $region58: #{tpu_custom_call.1} parent=1 // pred_check
      _
    $region59: #{tpu_custom_call.1} parent=1 // pred_check_branch
      %948 = sbr.rel (0) target = $region61
    $region60: #{tpu_custom_call.1} parent=1 // pred_region
      %950 = vsyncadd [#allocation4], 0
      %s951 = sshll.u32 [#allocation11], 4
      %s952 = int_to_ptr.vmem [resolvable:$true] %s951
      %s953 = sshll.u32 %s9, 4
      %s954 = int_to_ptr.hbm [resolvable:$true] %s953
      %959 = dma.vmem_to_hbm [thread:$0]  %s952, 1024, %s954, [#allocation4], 64, 64, 4
    $region61: #{tpu_custom_call.1} parent=1 // pred_fallthru
      _
    // Predicated region
    $region62: #{tpu_custom_call.1} parent=1 // pred_check
      _
    $region63: #{tpu_custom_call.1} parent=1 // pred_check_branch
      %961 = sbr.rel (0) target = $region65
    $region64: #{tpu_custom_call.1} parent=1 // pred_region
      %963 = dma.done [#allocation4], 1024
    $region65: #{tpu_custom_call.1} parent=1 // pred_fallthru
      _
    %964 = vsyncpa [#allocation3], 1
    %965 = vsyncpa [#allocation6], 1
    %966 = vsyncpa [#allocation9], 1
    %967 = vsyncpa [#allocation4], 1

// kernel: tpu_custom_call.1
$region0: #{tpu_custom_call.1}
  #allocation0 [shape = 'u32[]', space=smem, size = 0x4, offset = 0x4, fixed_abs, tag = 'smem constant byte address 0x4 - core index']
  #allocation1 [shape = 'u32[72,128]{1,0:T(1,128)}', space=vmem, size = 0x9000, scoped, tag = 'internal scratch']
  %s0 = inlined_call_operand.hbm [shape: f32[128,128], index: 0, kind: input, shape index: {}]
  %s1 = inlined_call_operand.hbm [shape: bf16[128,128], index: 1, kind: input, shape index: {}]
  %s2 = inlined_call_operand.vmem [shape: f32[1,128], index: 2, kind: input, shape index: {}]
  %s3 = inlined_call_operand.hbm [shape: bf16[128,128], index: 3, kind: input, shape index: {}]
  %s4 = inlined_call_operand.vmem [shape: f32[1,128], index: 4, kind: input, shape index: {}]
  %s5 = inlined_call_operand.hbm [shape: bf16[128,128], index: 5, kind: input, shape index: {}]
  %s6 = inlined_call_operand.vmem [shape: f32[1,128], index: 6, kind: input, shape index: {}]
  %s7 = inlined_call_operand.hbm [shape: bf16[128,128], index: 7, kind: input, shape index: {}]
  %s8 = inlined_call_operand.vmem [shape: f32[1,128], index: 8, kind: input, shape index: {}]
  %s9 = inlined_call_operand.hbm [shape: bf16[128,128], index: 9, kind: output, shape index: {}]
  %s10 = sld [smem:[#allocation0]]
  $region66: #{tpu_custom_call.1} parent=0
    _
  %s12 = ssub.s32 1, %s10
  %s13 = scalar_select 0, %s12, %s10
  $region1: #{tpu_custom_call.1} parent=0
    #allocation2 [shape = 'u8[65536]{0}', space=vmem, size = 0x10000, scoped, tag = 'input window, operand 0, single buffered']
    #allocation3 [shape = 's32[1]{0}', space=sflag, size = 0x4, scoped, tag = 'scoped memory for tpu_custom_call.1']
    #allocation4 [shape = 's32[1]{0}', space=sflag, size = 0x4, scoped, tag = 'scoped memory for tpu_custom_call.1']
    #allocation5 [shape = 'u8[32768]{0}', space=vmem, size = 0x8000, scoped, tag = 'input window, operand 1, single buffered']
    #allocation6 [shape = 's32[1]{0}', space=sflag, size = 0x4, scoped, tag = 'scoped memory for tpu_custom_call.1']
    #allocation7 [shape = 'u8[32768]{0}', space=vmem, size = 0x8000, scoped, tag = 'input window, operand 3, single buffered']
    #allocation8 [shape = 'u8[32768]{0}', space=vmem, size = 0x8000, scoped, tag = 'input window, operand 5, single buffered']
    #allocation9 [shape = 's32[1]{0}', space=sflag, size = 0x4, scoped, tag = 'scoped memory for tpu_custom_call.1']
    #allocation10 [shape = 'u8[32768]{0}', space=vmem, size = 0x8000, scoped, tag = 'input window, operand 7, single buffered']
    #allocation11 [shape = 'u8[32768]{0}', space=vmem, size = 0x8000, scoped, tag = 'output window, operand 0, single buffered']
    %14 = vsyncpa [#allocation3], 0
    %15 = vsyncpa [#allocation6], 0
    %16 = vsyncpa [#allocation9], 0
    %17 = vsyncpa [#allocation4], 0
    // Predicated region
    $region2: #{tpu_custom_call.1} parent=1 // pred_check
      _
    $region3: #{tpu_custom_call.1} parent=1 // pred_check_branch
      %19 = sbr.rel (0) target = $region5
    $region4: #{tpu_custom_call.1} parent=1 // pred_region
      %21 = vsyncadd [#allocation3], 0
      %s22 = sshll.u32 %s0, 4
      %s23 = int_to_ptr.hbm [resolvable:$true] %s22
      %s24 = sshll.u32 [#allocation2], 4
      %s25 = int_to_ptr.vmem [resolvable:$true] %s24
      %30 = dma.hbm_to_vmem [thread:$0]  %s23, 2048, %s25, [#allocation3], 128, 128, 8
    $region5: #{tpu_custom_call.1} parent=1 // pred_fallthru
      _
    // Predicated region
    $region6: #{tpu_custom_call.1} parent=1 // pred_check
      _
    $region7: #{tpu_custom_call.1} parent=1 // pred_check_branch
      %32 = sbr.rel (0) target = $region9
    $region8: #{tpu_custom_call.1} parent=1 // pred_region
      %34 = vsyncadd [#allocation6], 0
      %s35 = sshll.u32 %s1, 4
      %s36 = int_to_ptr.hbm [resolvable:$true] %s35
      %s37 = sshll.u32 [#allocation5], 4
      %s38 = int_to_ptr.vmem [resolvable:$true] %s37
      %43 = dma.hbm_to_vmem [thread:$0]  %s36, 1024, %s38, [#allocation6], 64, 64, 4
    $region9: #{tpu_custom_call.1} parent=1 // pred_fallthru
      _
    // Predicated region
    $region10: #{tpu_custom_call.1} parent=1 // pred_check
      _
    $region11: #{tpu_custom_call.1} parent=1 // pred_check_branch
      %45 = sbr.rel (0) target = $region13
    $region12: #{tpu_custom_call.1} parent=1 // pred_region
      _
    $region13: #{tpu_custom_call.1} parent=1 // pred_fallthru
      _
    // Predicated region
    $region14: #{tpu_custom_call.1} parent=1 // pred_check
      _
    $region15: #{tpu_custom_call.1} parent=1 // pred_check_branch
      %47 = sbr.rel (0) target = $region17
    $region16: #{tpu_custom_call.1} parent=1 // pred_region
      %49 = vsyncadd [#allocation6], 0
      %s50 = sshll.u32 %s3, 4
      %s51 = int_to_ptr.hbm [resolvable:$true] %s50
      %s52 = sshll.u32 [#allocation7], 4
      %s53 = int_to_ptr.vmem [resolvable:$true] %s52
      %58 = dma.hbm_to_vmem [thread:$0]  %s51, 1024, %s53, [#allocation6], 64, 64, 4
    $region17: #{tpu_custom_call.1} parent=1 // pred_fallthru
      _
    // Predicated region
    $region18: #{tpu_custom_call.1} parent=1 // pred_check
      _
    $region19: #{tpu_custom_call.1} parent=1 // pred_check_branch
      %60 = sbr.rel (0) target = $region21
    $region20: #{tpu_custom_call.1} parent=1 // pred_region
      _
    $region21: #{tpu_custom_call.1} parent=1 // pred_fallthru
      _
    // Predicated region
    $region22: #{tpu_custom_call.1} parent=1 // pred_check
      _
    $region23: #{tpu_custom_call.1} parent=1 // pred_check_branch
      %62 = sbr.rel (0) target = $region25
    $region24: #{tpu_custom_call.1} parent=1 // pred_region
      %64 = vsyncadd [#allocation9], 0
      %s65 = sshll.u32 %s5, 4
      %s66 = int_to_ptr.hbm [resolvable:$true] %s65
      %s67 = sshll.u32 [#allocation8], 4
      %s68 = int_to_ptr.vmem [resolvable:$true] %s67
      %73 = dma.hbm_to_vmem [thread:$0]  %s66, 1024, %s68, [#allocation9], 64, 64, 4
    $region25: #{tpu_custom_call.1} parent=1 // pred_fallthru
      _
    // Predicated region
    $region26: #{tpu_custom_call.1} parent=1 // pred_check
      _
    $region27: #{tpu_custom_call.1} parent=1 // pred_check_branch
      %75 = sbr.rel (0) target = $region29
    $region28: #{tpu_custom_call.1} parent=1 // pred_region
      _
    $region29: #{tpu_custom_call.1} parent=1 // pred_fallthru
      _
    // Predicated region
    $region30: #{tpu_custom_call.1} parent=1 // pred_check
      _
    $region31: #{tpu_custom_call.1} parent=1 // pred_check_branch
      %77 = sbr.rel (0) target = $region33
    $region32: #{tpu_custom_call.1} parent=1 // pred_region
      %79 = vsyncadd [#allocation9], 0
      %s80 = sshll.u32 %s7, 4
      %s81 = int_to_ptr.hbm [resolvable:$true] %s80
      %s82 = sshll.u32 [#allocation10], 4
      %s83 = int_to_ptr.vmem [resolvable:$true] %s82
      %88 = dma.hbm_to_vmem [thread:$0]  %s81, 1024, %s83, [#allocation9], 64, 64, 4
    $region33: #{tpu_custom_call.1} parent=1 // pred_fallthru
      _
    // Predicated region
    $region34: #{tpu_custom_call.1} parent=1 // pred_check
      _
    $region35: #{tpu_custom_call.1} parent=1 // pred_check_branch
      %90 = sbr.rel (0) target = $region37
    $region36: #{tpu_custom_call.1} parent=1 // pred_region
      _
    $region37: #{tpu_custom_call.1} parent=1 // pred_fallthru
      _
    // Predicated region
    $region38: #{tpu_custom_call.1} parent=1 // pred_check
      _
    $region39: #{tpu_custom_call.1} parent=1 // pred_check_branch
      %92 = sbr.rel (0) target = $region41
    $region40: #{tpu_custom_call.1} parent=1 // pred_region
      %94 = dma.done [#allocation3], 2048
    $region41: #{tpu_custom_call.1} parent=1 // pred_fallthru
      _
    // Predicated region
    $region42: #{tpu_custom_call.1} parent=1 // pred_check
      _
    $region43: #{tpu_custom_call.1} parent=1 // pred_check_branch
      %96 = sbr.rel (0) target = $region45
    $region44: #{tpu_custom_call.1} parent=1 // pred_region
      %98 = dma.done [#allocation6], 1024
    $region45: #{tpu_custom_call.1} parent=1 // pred_fallthru
      _
    // Predicated region
    $region46: #{tpu_custom_call.1} parent=1 // pred_check
      _
    $region47: #{tpu_custom_call.1} parent=1 // pred_check_branch
      %100 = sbr.rel (0) target = $region49
    $region48: #{tpu_custom_call.1} parent=1 // pred_region
      %102 = dma.done [#allocation6], 1024
    $region49: #{tpu_custom_call.1} parent=1 // pred_fallthru
      _
    // Predicated region
    $region50: #{tpu_custom_call.1} parent=1 // pred_check
      _
    $region51: #{tpu_custom_call.1} parent=1 // pred_check_branch
      %104 = sbr.rel (0) target = $region53
    $region52: #{tpu_custom_call.1} parent=1 // pred_region
      %106 = dma.done [#allocation9], 1024
    $region53: #{tpu_custom_call.1} parent=1 // pred_fallthru
      _
    // Predicated region
    $region54: #{tpu_custom_call.1} parent=1 // pred_check
      _
    $region55: #{tpu_custom_call.1} parent=1 // pred_check_branch
      %108 = sbr.rel (0) target = $region57
    $region56: #{tpu_custom_call.1} parent=1 // pred_region
      %110 = dma.done [#allocation9], 1024
    $region57: #{tpu_custom_call.1} parent=1 // pred_fallthru
      _
    %v111 = vld [vmem:[#allocation2] sm:$0xff]
    %v112 = vld [vmem:[#allocation2 + $0x8] sm:$0xff]
    %v113 = vld [vmem:[#allocation2 + $0x10] sm:$0xff]
    %v114 = vld [vmem:[#allocation2 + $0x18] sm:$0xff]
    %v115 = vld [vmem:[#allocation2 + $0x20] sm:$0xff]
    %v116 = vld [vmem:[#allocation2 + $0x28] sm:$0xff]
    %v117 = vld [vmem:[#allocation2 + $0x30] sm:$0xff]
    %v118 = vld [vmem:[#allocation2 + $0x38] sm:$0xff]
    %v119 = vld [vmem:[#allocation2 + $0x40] sm:$0xff]
    %v120 = vld [vmem:[#allocation2 + $0x48] sm:$0xff]
    %v121 = vld [vmem:[#allocation2 + $0x50] sm:$0xff]
    %v122 = vld [vmem:[#allocation2 + $0x58] sm:$0xff]
    %v123 = vld [vmem:[#allocation2 + $0x60] sm:$0xff]
    %v124 = vld [vmem:[#allocation2 + $0x68] sm:$0xff]
    %v125 = vld [vmem:[#allocation2 + $0x70] sm:$0xff]
    %v126 = vld [vmem:[#allocation2 + $0x78] sm:$0xff]
    %v127 = vmul.f32 %v111, %v111
    %v128 = vmul.f32 %v112, %v112
    %v129 = vmul.f32 %v113, %v113
    %v130 = vmul.f32 %v114, %v114
    %v131 = vmul.f32 %v115, %v115
    %v132 = vmul.f32 %v116, %v116
    %v133 = vmul.f32 %v117, %v117
    %v134 = vmul.f32 %v118, %v118
    %v135 = vmul.f32 %v119, %v119
    %v136 = vmul.f32 %v120, %v120
    %v137 = vmul.f32 %v121, %v121
    %v138 = vmul.f32 %v122, %v122
    %v139 = vmul.f32 %v123, %v123
    %v140 = vmul.f32 %v124, %v124
    %v141 = vmul.f32 %v125, %v125
    %v142 = vmul.f32 %v126, %v126
    %143 = vadd.xlane.f32.xlu0 %v127
    %v144 = vpop.xlane.xlu0 %143
    %145 = vadd.xlane.f32.xlu0 %v128
    %v146 = vpop.xlane.xlu0 %145
    %147 = vadd.xlane.f32.xlu0 %v129
    %v148 = vpop.xlane.xlu0 %147
    %149 = vadd.xlane.f32.xlu0 %v130
    %v150 = vpop.xlane.xlu0 %149
    %151 = vadd.xlane.f32.xlu0 %v131
    %v152 = vpop.xlane.xlu0 %151
    %153 = vadd.xlane.f32.xlu0 %v132
    %v154 = vpop.xlane.xlu0 %153
    %155 = vadd.xlane.f32.xlu0 %v133
    %v156 = vpop.xlane.xlu0 %155
    %157 = vadd.xlane.f32.xlu0 %v134
    %v158 = vpop.xlane.xlu0 %157
    %159 = vadd.xlane.f32.xlu0 %v135
    %v160 = vpop.xlane.xlu0 %159
    %161 = vadd.xlane.f32.xlu0 %v136
    %v162 = vpop.xlane.xlu0 %161
    %163 = vadd.xlane.f32.xlu0 %v137
    %v164 = vpop.xlane.xlu0 %163
    %165 = vadd.xlane.f32.xlu0 %v138
    %v166 = vpop.xlane.xlu0 %165
    %167 = vadd.xlane.f32.xlu0 %v139
    %v168 = vpop.xlane.xlu0 %167
    %169 = vadd.xlane.f32.xlu0 %v140
    %v170 = vpop.xlane.xlu0 %169
    %171 = vadd.xlane.f32.xlu0 %v141
    %v172 = vpop.xlane.xlu0 %171
    %173 = vadd.xlane.f32.xlu0 %v142
    %v174 = vpop.xlane.xlu0 %173
    %v175 = vmax.f32 %v144, 1e-24
    %v176 = vmax.f32 %v146, 1e-24
    %v177 = vmax.f32 %v148, 1e-24
    %v178 = vmax.f32 %v150, 1e-24
    %v179 = vmax.f32 %v152, 1e-24
    %v180 = vmax.f32 %v154, 1e-24
    %v181 = vmax.f32 %v156, 1e-24
    %v182 = vmax.f32 %v158, 1e-24
    %v183 = vmax.f32 %v160, 1e-24
    %v184 = vmax.f32 %v162, 1e-24
    %v185 = vmax.f32 %v164, 1e-24
    %v186 = vmax.f32 %v166, 1e-24
    %v187 = vmax.f32 %v168, 1e-24
    %v188 = vmax.f32 %v170, 1e-24
    %v189 = vmax.f32 %v172, 1e-24
    %v190 = vmax.f32 %v174, 1e-24
    %v191 = vrsqrt.pop %v175
    %v192 = vmul.f32 %v191, %v175
    %v193 = vmul.f32 %v192, %v191
    %v194 = vmul.f32 0.5, %v193
    %v195 = vsub.f32 1.5, %v194
    %v196 = vmul.f32 %v191, %v195
    %vm197 = vweird.f32 %v175
    %vm198 = vweird.f32 %v191
    %vm199 = vmor %vm197, %vm198
    %v200 = vsel %vm199, %v191, %v196
    %v201 = vrsqrt.pop %v176
    %v202 = vmul.f32 %v201, %v176
    %v203 = vmul.f32 %v202, %v201
    %v204 = vmul.f32 0.5, %v203
    %v205 = vsub.f32 1.5, %v204
    %v206 = vmul.f32 %v201, %v205
    %vm207 = vweird.f32 %v176
    %vm208 = vweird.f32 %v201
    %vm209 = vmor %vm207, %vm208
    %v210 = vsel %vm209, %v201, %v206
    %v211 = vrsqrt.pop %v177
    %v212 = vmul.f32 %v211, %v177
    %v213 = vmul.f32 %v212, %v211
    %v214 = vmul.f32 0.5, %v213
    %v215 = vsub.f32 1.5, %v214
    %v216 = vmul.f32 %v211, %v215
    %vm217 = vweird.f32 %v177
    %vm218 = vweird.f32 %v211
    %vm219 = vmor %vm217, %vm218
    %v220 = vsel %vm219, %v211, %v216
    %v221 = vrsqrt.pop %v178
    %v222 = vmul.f32 %v221, %v178
    %v223 = vmul.f32 %v222, %v221
    %v224 = vmul.f32 0.5, %v223
    %v225 = vsub.f32 1.5, %v224
    %v226 = vmul.f32 %v221, %v225
    %vm227 = vweird.f32 %v178
    %vm228 = vweird.f32 %v221
    %vm229 = vmor %vm227, %vm228
    %v230 = vsel %vm229, %v221, %v226
    %v231 = vrsqrt.pop %v179
    %v232 = vmul.f32 %v231, %v179
    %v233 = vmul.f32 %v232, %v231
    %v234 = vmul.f32 0.5, %v233
    %v235 = vsub.f32 1.5, %v234
    %v236 = vmul.f32 %v231, %v235
    %vm237 = vweird.f32 %v179
    %vm238 = vweird.f32 %v231
    %vm239 = vmor %vm237, %vm238
    %v240 = vsel %vm239, %v231, %v236
    %v241 = vrsqrt.pop %v180
    %v242 = vmul.f32 %v241, %v180
    %v243 = vmul.f32 %v242, %v241
    %v244 = vmul.f32 0.5, %v243
    %v245 = vsub.f32 1.5, %v244
    %v246 = vmul.f32 %v241, %v245
    %vm247 = vweird.f32 %v180
    %vm248 = vweird.f32 %v241
    %vm249 = vmor %vm247, %vm248
    %v250 = vsel %vm249, %v241, %v246
    %v251 = vrsqrt.pop %v181
    %v252 = vmul.f32 %v251, %v181
    %v253 = vmul.f32 %v252, %v251
    %v254 = vmul.f32 0.5, %v253
    %v255 = vsub.f32 1.5, %v254
    %v256 = vmul.f32 %v251, %v255
    %vm257 = vweird.f32 %v181
    %vm258 = vweird.f32 %v251
    %vm259 = vmor %vm257, %vm258
    %v260 = vsel %vm259, %v251, %v256
    %v261 = vrsqrt.pop %v182
    %v262 = vmul.f32 %v261, %v182
    %v263 = vmul.f32 %v262, %v261
    %v264 = vmul.f32 0.5, %v263
    %v265 = vsub.f32 1.5, %v264
    %v266 = vmul.f32 %v261, %v265
    %vm267 = vweird.f32 %v182
    %vm268 = vweird.f32 %v261
    %vm269 = vmor %vm267, %vm268
    %v270 = vsel %vm269, %v261, %v266
    %v271 = vrsqrt.pop %v183
    %v272 = vmul.f32 %v271, %v183
    %v273 = vmul.f32 %v272, %v271
    %v274 = vmul.f32 0.5, %v273
    %v275 = vsub.f32 1.5, %v274
    %v276 = vmul.f32 %v271, %v275
    %vm277 = vweird.f32 %v183
    %vm278 = vweird.f32 %v271
    %vm279 = vmor %vm277, %vm278
    %v280 = vsel %vm279, %v271, %v276
    %v281 = vrsqrt.pop %v184
    %v282 = vmul.f32 %v281, %v184
    %v283 = vmul.f32 %v282, %v281
    %v284 = vmul.f32 0.5, %v283
    %v285 = vsub.f32 1.5, %v284
    %v286 = vmul.f32 %v281, %v285
    %vm287 = vweird.f32 %v184
    %vm288 = vweird.f32 %v281
    %vm289 = vmor %vm287, %vm288
    %v290 = vsel %vm289, %v281, %v286
    %v291 = vrsqrt.pop %v185
    %v292 = vmul.f32 %v291, %v185
    %v293 = vmul.f32 %v292, %v291
    %v294 = vmul.f32 0.5, %v293
    %v295 = vsub.f32 1.5, %v294
    %v296 = vmul.f32 %v291, %v295
    %vm297 = vweird.f32 %v185
    %vm298 = vweird.f32 %v291
    %vm299 = vmor %vm297, %vm298
    %v300 = vsel %vm299, %v291, %v296
    %v301 = vrsqrt.pop %v186
    %v302 = vmul.f32 %v301, %v186
    %v303 = vmul.f32 %v302, %v301
    %v304 = vmul.f32 0.5, %v303
    %v305 = vsub.f32 1.5, %v304
    %v306 = vmul.f32 %v301, %v305
    %vm307 = vweird.f32 %v186
    %vm308 = vweird.f32 %v301
    %vm309 = vmor %vm307, %vm308
    %v310 = vsel %vm309, %v301, %v306
    %v311 = vrsqrt.pop %v187
    %v312 = vmul.f32 %v311, %v187
    %v313 = vmul.f32 %v312, %v311
    %v314 = vmul.f32 0.5, %v313
    %v315 = vsub.f32 1.5, %v314
    %v316 = vmul.f32 %v311, %v315
    %vm317 = vweird.f32 %v187
    %vm318 = vweird.f32 %v311
    %vm319 = vmor %vm317, %vm318
    %v320 = vsel %vm319, %v311, %v316
    %v321 = vrsqrt.pop %v188
    %v322 = vmul.f32 %v321, %v188
    %v323 = vmul.f32 %v322, %v321
    %v324 = vmul.f32 0.5, %v323
    %v325 = vsub.f32 1.5, %v324
    %v326 = vmul.f32 %v321, %v325
    %vm327 = vweird.f32 %v188
    %vm328 = vweird.f32 %v321
    %vm329 = vmor %vm327, %vm328
    %v330 = vsel %vm329, %v321, %v326
    %v331 = vrsqrt.pop %v189
    %v332 = vmul.f32 %v331, %v189
    %v333 = vmul.f32 %v332, %v331
    %v334 = vmul.f32 0.5, %v333
    %v335 = vsub.f32 1.5, %v334
    %v336 = vmul.f32 %v331, %v335
    %vm337 = vweird.f32 %v189
    %vm338 = vweird.f32 %v331
    %vm339 = vmor %vm337, %vm338
    %v340 = vsel %vm339, %v331, %v336
    %v341 = vrsqrt.pop %v190
    %v342 = vmul.f32 %v341, %v190
    %v343 = vmul.f32 %v342, %v341
    %v344 = vmul.f32 0.5, %v343
    %v345 = vsub.f32 1.5, %v344
    %v346 = vmul.f32 %v341, %v345
    %vm347 = vweird.f32 %v190
    %vm348 = vweird.f32 %v341
    %vm349 = vmor %vm347, %vm348
    %v350 = vsel %vm349, %v341, %v346
    %v351 = vpack.c.bf16 %v112, %v111
    %v352 = vpack.c.bf16 %v114, %v113
    %v353 = vpack.c.bf16 %v116, %v115
    %v354 = vpack.c.bf16 %v118, %v117
    %v355 = vpack.c.bf16 %v120, %v119
    %v356 = vpack.c.bf16 %v122, %v121
    %v357 = vpack.c.bf16 %v124, %v123
    %v358 = vpack.c.bf16 %v126, %v125
    %v359 = vld [vmem:[#allocation5] sm:$0xf]
    %v360 = vld [vmem:[#allocation5 + $0x4] sm:$0xf]
    %v361 = vld [vmem:[#allocation5 + $0x8] sm:$0xf]
    %v362 = vld [vmem:[#allocation5 + $0xc] sm:$0xf]
    %v363 = vld [vmem:[#allocation5 + $0x10] sm:$0xf]
    %v364 = vld [vmem:[#allocation5 + $0x14] sm:$0xf]
    %v365 = vld [vmem:[#allocation5 + $0x18] sm:$0xf]
    %v366 = vld [vmem:[#allocation5 + $0x1c] sm:$0xf]
    %v367 = vld [vmem:[#allocation5 + $0x20] sm:$0xf]
    %v368 = vld [vmem:[#allocation5 + $0x24] sm:$0xf]
    %v369 = vld [vmem:[#allocation5 + $0x28] sm:$0xf]
    %v370 = vld [vmem:[#allocation5 + $0x2c] sm:$0xf]
    %v371 = vld [vmem:[#allocation5 + $0x30] sm:$0xf]
    %v372 = vld [vmem:[#allocation5 + $0x34] sm:$0xf]
    %v373 = vld [vmem:[#allocation5 + $0x38] sm:$0xf]
    %v374 = vld [vmem:[#allocation5 + $0x3c] sm:$0xf]
    %v391 = vunpack.c.l.b16 %v359
    %v392 = vunpack.c.l.b16 %v360
    %v393 = vunpack.c.l.b16 %v361
    %v394 = vunpack.c.l.b16 %v362
    %v395 = vunpack.c.l.b16 %v363
    %v396 = vunpack.c.l.b16 %v364
    %v397 = vunpack.c.l.b16 %v365
    %v398 = vunpack.c.l.b16 %v366
    %v399 = vunpack.c.l.b16 %v367
    %v400 = vunpack.c.l.b16 %v368
    %v401 = vunpack.c.l.b16 %v369
    %v402 = vunpack.c.l.b16 %v370
    %v403 = vunpack.c.l.b16 %v371
    %v404 = vunpack.c.l.b16 %v372
    %v405 = vunpack.c.l.b16 %v373
    %v406 = vunpack.c.l.b16 %v374
    %v407 = vpack.c.b16 %v392, %v391
    %v408 = vpack.c.b16 %v394, %v393
    %v409 = vpack.c.b16 %v396, %v395
    %v410 = vpack.c.b16 %v398, %v397
    %v411 = vpack.c.b16 %v400, %v399
    %v412 = vpack.c.b16 %v402, %v401
    %v413 = vpack.c.b16 %v404, %v403
    %v414 = vpack.c.b16 %v406, %v405
    %423 = vmatpush.bf16.msra.mxu0 %v414
    %424 = vmatpush.bf16.msra.mxu0 %v413
    %425 = vmatpush.bf16.msra.mxu0 %v412
    %426 = vmatpush.bf16.msra.mxu0 %v411
    %427 = vmatpush.bf16.msra.mxu0 %v410
    %428 = vmatpush.bf16.msra.mxu0 %v409
    %429 = vmatpush.bf16.msra.mxu0 %v408
    %430 = vmatpush.bf16.msra.mxu0 %v407
    %431 = vmatmul.bf16.gmra.mxu0 %v351
    %v432 = vpop.f32.mrf.mxu0
    %v433 = vadd.f32 0.0, %v432
    %v434 = vpop.f32.mrf.mxu0
    %v435 = vadd.f32 0.0, %v434
    %436 = vmatmul.bf16.gmra.mxu0 %v352
    %v437 = vpop.f32.mrf.mxu0
    %v438 = vadd.f32 0.0, %v437
    %v439 = vpop.f32.mrf.mxu0
    %v440 = vadd.f32 0.0, %v439
    %441 = vmatmul.bf16.gmra.mxu0 %v353
    %v442 = vpop.f32.mrf.mxu0
    %v443 = vadd.f32 0.0, %v442
    %v444 = vpop.f32.mrf.mxu0
    %v445 = vadd.f32 0.0, %v444
    %446 = vmatmul.bf16.gmra.mxu0 %v354
    %v447 = vpop.f32.mrf.mxu0
    %v448 = vadd.f32 0.0, %v447
    %v449 = vpop.f32.mrf.mxu0
    %v450 = vadd.f32 0.0, %v449
    %451 = vmatmul.bf16.gmra.mxu0 %v355
    %v452 = vpop.f32.mrf.mxu0
    %v453 = vadd.f32 0.0, %v452
    %v454 = vpop.f32.mrf.mxu0
    %v455 = vadd.f32 0.0, %v454
    %456 = vmatmul.bf16.gmra.mxu0 %v356
    %v457 = vpop.f32.mrf.mxu0
    %v458 = vadd.f32 0.0, %v457
    %v459 = vpop.f32.mrf.mxu0
    %v460 = vadd.f32 0.0, %v459
    %461 = vmatmul.bf16.gmra.mxu0 %v357
    %v462 = vpop.f32.mrf.mxu0
    %v463 = vadd.f32 0.0, %v462
    %v464 = vpop.f32.mrf.mxu0
    %v465 = vadd.f32 0.0, %v464
    %466 = vmatmul.bf16.gmra.mxu0 %v358
    %v467 = vpop.f32.mrf.mxu0
    %v468 = vadd.f32 0.0, %v467
    %v469 = vpop.f32.mrf.mxu0
    %v470 = vadd.f32 0.0, %v469
    %471 = vdwg.mxu0
    %v472 = vmul.f32 %v433, %v200
    %v473 = vmul.f32 %v435, %v210
    %v474 = vmul.f32 %v438, %v220
    %v475 = vmul.f32 %v440, %v230
    %v476 = vmul.f32 %v443, %v240
    %v477 = vmul.f32 %v445, %v250
    %v478 = vmul.f32 %v448, %v260
    %v479 = vmul.f32 %v450, %v270
    %v480 = vmul.f32 %v453, %v280
    %v481 = vmul.f32 %v455, %v290
    %v482 = vmul.f32 %v458, %v300
    %v483 = vmul.f32 %v460, %v310
    %v484 = vmul.f32 %v463, %v320
    %v485 = vmul.f32 %v465, %v330
    %v486 = vmul.f32 %v468, %v340
    %v487 = vmul.f32 %v470, %v350
    %v488 = vld [vmem:[%s2] sm:$0x1]
    %v490 = vperm.slane %v488, 0
    %v492 = vadd.f32 %v472, %v490
    %v493 = vadd.f32 %v473, %v490
    %v494 = vadd.f32 %v474, %v490
    %v495 = vadd.f32 %v475, %v490
    %v496 = vadd.f32 %v476, %v490
    %v497 = vadd.f32 %v477, %v490
    %v498 = vadd.f32 %v478, %v490
    %v499 = vadd.f32 %v479, %v490
    %v500 = vadd.f32 %v480, %v490
    %v501 = vadd.f32 %v481, %v490
    %v502 = vadd.f32 %v482, %v490
    %v503 = vadd.f32 %v483, %v490
    %v504 = vadd.f32 %v484, %v490
    %v505 = vadd.f32 %v485, %v490
    %v506 = vadd.f32 %v486, %v490
    %v507 = vadd.f32 %v487, %v490
    %v508 = vtanh.pop %v492
    %v509 = vtanh.pop %v493
    %v510 = vtanh.pop %v494
    %v511 = vtanh.pop %v495
    %v512 = vtanh.pop %v496
    %v513 = vtanh.pop %v497
    %v514 = vtanh.pop %v498
    %v515 = vtanh.pop %v499
    %v516 = vtanh.pop %v500
    %v517 = vtanh.pop %v501
    %v518 = vtanh.pop %v502
    %v519 = vtanh.pop %v503
    %v520 = vtanh.pop %v504
    %v521 = vtanh.pop %v505
    %v522 = vtanh.pop %v506
    %v523 = vtanh.pop %v507
    %v524 = vpack.c.bf16 %v509, %v508
    %v525 = vpack.c.bf16 %v511, %v510
    %v526 = vpack.c.bf16 %v513, %v512
    %v527 = vpack.c.bf16 %v515, %v514
    %v528 = vpack.c.bf16 %v517, %v516
    %v529 = vpack.c.bf16 %v519, %v518
    %v530 = vpack.c.bf16 %v521, %v520
    %v531 = vpack.c.bf16 %v523, %v522
    %v532 = vld [vmem:[#allocation7] sm:$0xf]
    %v533 = vld [vmem:[#allocation7 + $0x4] sm:$0xf]
    %v534 = vld [vmem:[#allocation7 + $0x8] sm:$0xf]
    %v535 = vld [vmem:[#allocation7 + $0xc] sm:$0xf]
    %v536 = vld [vmem:[#allocation7 + $0x10] sm:$0xf]
    %v537 = vld [vmem:[#allocation7 + $0x14] sm:$0xf]
    %v538 = vld [vmem:[#allocation7 + $0x18] sm:$0xf]
    %v539 = vld [vmem:[#allocation7 + $0x1c] sm:$0xf]
    %v540 = vld [vmem:[#allocation7 + $0x20] sm:$0xf]
    %v541 = vld [vmem:[#allocation7 + $0x24] sm:$0xf]
    %v542 = vld [vmem:[#allocation7 + $0x28] sm:$0xf]
    %v543 = vld [vmem:[#allocation7 + $0x2c] sm:$0xf]
    %v544 = vld [vmem:[#allocation7 + $0x30] sm:$0xf]
    %v545 = vld [vmem:[#allocation7 + $0x34] sm:$0xf]
    %v546 = vld [vmem:[#allocation7 + $0x38] sm:$0xf]
    %v547 = vld [vmem:[#allocation7 + $0x3c] sm:$0xf]
    %v548 = vld [vmem:[%s4] sm:$0x1]
    %v550 = vperm.slane %v548, 0
    %v568 = vunpack.c.l.b16 %v532
    %v569 = vunpack.c.l.b16 %v533
    %v570 = vunpack.c.l.b16 %v534
    %v571 = vunpack.c.l.b16 %v535
    %v572 = vunpack.c.l.b16 %v536
    %v573 = vunpack.c.l.b16 %v537
    %v574 = vunpack.c.l.b16 %v538
    %v575 = vunpack.c.l.b16 %v539
    %v576 = vunpack.c.l.b16 %v540
    %v577 = vunpack.c.l.b16 %v541
    %v578 = vunpack.c.l.b16 %v542
    %v579 = vunpack.c.l.b16 %v543
    %v580 = vunpack.c.l.b16 %v544
    %v581 = vunpack.c.l.b16 %v545
    %v582 = vunpack.c.l.b16 %v546
    %v583 = vunpack.c.l.b16 %v547
    %v584 = vpack.c.b16 %v569, %v568
    %v585 = vpack.c.b16 %v571, %v570
    %v586 = vpack.c.b16 %v573, %v572
    %v587 = vpack.c.b16 %v575, %v574
    %v588 = vpack.c.b16 %v577, %v576
    %v589 = vpack.c.b16 %v579, %v578
    %v590 = vpack.c.b16 %v581, %v580
    %v591 = vpack.c.b16 %v583, %v582
    %600 = vmatpush.bf16.msra.mxu0 %v591
    %601 = vmatpush.bf16.msra.mxu0 %v590
    %602 = vmatpush.bf16.msra.mxu0 %v589
    %603 = vmatpush.bf16.msra.mxu0 %v588
    %604 = vmatpush.bf16.msra.mxu0 %v587
    %605 = vmatpush.bf16.msra.mxu0 %v586
    %606 = vmatpush.bf16.msra.mxu0 %v585
    %607 = vmatpush.bf16.msra.mxu0 %v584
    %608 = vmatmul.bf16.gmra.mxu0 %v524
    %v609 = vpop.f32.mrf.mxu0
    %v610 = vadd.f32 %v550, %v609
    %v611 = vpop.f32.mrf.mxu0
    %v612 = vadd.f32 %v550, %v611
    %613 = vmatmul.bf16.gmra.mxu0 %v525
    %v614 = vpop.f32.mrf.mxu0
    %v615 = vadd.f32 %v550, %v614
    %v616 = vpop.f32.mrf.mxu0
    %v617 = vadd.f32 %v550, %v616
    %618 = vmatmul.bf16.gmra.mxu0 %v526
    %v619 = vpop.f32.mrf.mxu0
    %v620 = vadd.f32 %v550, %v619
    %v621 = vpop.f32.mrf.mxu0
    %v622 = vadd.f32 %v550, %v621
    %623 = vmatmul.bf16.gmra.mxu0 %v527
    %v624 = vpop.f32.mrf.mxu0
    %v625 = vadd.f32 %v550, %v624
    %v626 = vpop.f32.mrf.mxu0
    %v627 = vadd.f32 %v550, %v626
    %628 = vmatmul.bf16.gmra.mxu0 %v528
    %v629 = vpop.f32.mrf.mxu0
    %v630 = vadd.f32 %v550, %v629
    %v631 = vpop.f32.mrf.mxu0
    %v632 = vadd.f32 %v550, %v631
    %633 = vmatmul.bf16.gmra.mxu0 %v529
    %v634 = vpop.f32.mrf.mxu0
    %v635 = vadd.f32 %v550, %v634
    %v636 = vpop.f32.mrf.mxu0
    %v637 = vadd.f32 %v550, %v636
    %638 = vmatmul.bf16.gmra.mxu0 %v530
    %v639 = vpop.f32.mrf.mxu0
    %v640 = vadd.f32 %v550, %v639
    %v641 = vpop.f32.mrf.mxu0
    %v642 = vadd.f32 %v550, %v641
    %643 = vmatmul.bf16.gmra.mxu0 %v531
    %v644 = vpop.f32.mrf.mxu0
    %v645 = vadd.f32 %v550, %v644
    %v646 = vpop.f32.mrf.mxu0
    %v647 = vadd.f32 %v550, %v646
    %648 = vdwg.mxu0
    %v649 = vpack.c.bf16 %v612, %v610
    %v650 = vpack.c.bf16 %v617, %v615
    %v651 = vpack.c.bf16 %v622, %v620
    %v652 = vpack.c.bf16 %v627, %v625
    %v653 = vpack.c.bf16 %v632, %v630
    %v654 = vpack.c.bf16 %v637, %v635
    %v655 = vpack.c.bf16 %v642, %v640
    %v656 = vpack.c.bf16 %v647, %v645
    %v657 = vld [vmem:[#allocation8] sm:$0xf]
    %v658 = vld [vmem:[#allocation8 + $0x4] sm:$0xf]
    %v659 = vld [vmem:[#allocation8 + $0x8] sm:$0xf]
    %v660 = vld [vmem:[#allocation8 + $0xc] sm:$0xf]
    %v661 = vld [vmem:[#allocation8 + $0x10] sm:$0xf]
    %v662 = vld [vmem:[#allocation8 + $0x14] sm:$0xf]
    %v663 = vld [vmem:[#allocation8 + $0x18] sm:$0xf]
    %v664 = vld [vmem:[#allocation8 + $0x1c] sm:$0xf]
    %v665 = vld [vmem:[#allocation8 + $0x20] sm:$0xf]
    %v666 = vld [vmem:[#allocation8 + $0x24] sm:$0xf]
    %v667 = vld [vmem:[#allocation8 + $0x28] sm:$0xf]
    %v668 = vld [vmem:[#allocation8 + $0x2c] sm:$0xf]
    %v669 = vld [vmem:[#allocation8 + $0x30] sm:$0xf]
    %v670 = vld [vmem:[#allocation8 + $0x34] sm:$0xf]
    %v671 = vld [vmem:[#allocation8 + $0x38] sm:$0xf]
    %v672 = vld [vmem:[#allocation8 + $0x3c] sm:$0xf]
    %v673 = vld [vmem:[%s6] sm:$0x1]
    %v675 = vperm.slane %v673, 0
    %v693 = vunpack.c.l.b16 %v657
    %v694 = vunpack.c.l.b16 %v658
    %v695 = vunpack.c.l.b16 %v659
    %v696 = vunpack.c.l.b16 %v660
    %v697 = vunpack.c.l.b16 %v661
    %v698 = vunpack.c.l.b16 %v662
    %v699 = vunpack.c.l.b16 %v663
    %v700 = vunpack.c.l.b16 %v664
    %v701 = vunpack.c.l.b16 %v665
    %v702 = vunpack.c.l.b16 %v666
    %v703 = vunpack.c.l.b16 %v667
    %v704 = vunpack.c.l.b16 %v668
    %v705 = vunpack.c.l.b16 %v669
    %v706 = vunpack.c.l.b16 %v670
    %v707 = vunpack.c.l.b16 %v671
    %v708 = vunpack.c.l.b16 %v672
    %v709 = vpack.c.b16 %v694, %v693
    %v710 = vpack.c.b16 %v696, %v695
    %v711 = vpack.c.b16 %v698, %v697
    %v712 = vpack.c.b16 %v700, %v699
    %v713 = vpack.c.b16 %v702, %v701
    %v714 = vpack.c.b16 %v704, %v703
    %v715 = vpack.c.b16 %v706, %v705
    %v716 = vpack.c.b16 %v708, %v707
    %725 = vmatpush.bf16.msra.mxu0 %v716
    %726 = vmatpush.bf16.msra.mxu0 %v715
    %727 = vmatpush.bf16.msra.mxu0 %v714
    %728 = vmatpush.bf16.msra.mxu0 %v713
    %729 = vmatpush.bf16.msra.mxu0 %v712
    %730 = vmatpush.bf16.msra.mxu0 %v711
    %731 = vmatpush.bf16.msra.mxu0 %v710
    %732 = vmatpush.bf16.msra.mxu0 %v709
    %733 = vmatmul.bf16.gmra.mxu0 %v649
    %v734 = vpop.f32.mrf.mxu0
    %v735 = vadd.f32 %v675, %v734
    %v736 = vpop.f32.mrf.mxu0
    %v737 = vadd.f32 %v675, %v736
    %738 = vmatmul.bf16.gmra.mxu0 %v650
    %v739 = vpop.f32.mrf.mxu0
    %v740 = vadd.f32 %v675, %v739
    %v741 = vpop.f32.mrf.mxu0
    %v742 = vadd.f32 %v675, %v741
    %743 = vmatmul.bf16.gmra.mxu0 %v651
    %v744 = vpop.f32.mrf.mxu0
    %v745 = vadd.f32 %v675, %v744
    %v746 = vpop.f32.mrf.mxu0
    %v747 = vadd.f32 %v675, %v746
    %748 = vmatmul.bf16.gmra.mxu0 %v652
    %v749 = vpop.f32.mrf.mxu0
    %v750 = vadd.f32 %v675, %v749
    %v751 = vpop.f32.mrf.mxu0
    %v752 = vadd.f32 %v675, %v751
    %753 = vmatmul.bf16.gmra.mxu0 %v653
    %v754 = vpop.f32.mrf.mxu0
    %v755 = vadd.f32 %v675, %v754
    %v756 = vpop.f32.mrf.mxu0
    %v757 = vadd.f32 %v675, %v756
    %758 = vmatmul.bf16.gmra.mxu0 %v654
    %v759 = vpop.f32.mrf.mxu0
    %v760 = vadd.f32 %v675, %v759
    %v761 = vpop.f32.mrf.mxu0
    %v762 = vadd.f32 %v675, %v761
    %763 = vmatmul.bf16.gmra.mxu0 %v655
    %v764 = vpop.f32.mrf.mxu0
    %v765 = vadd.f32 %v675, %v764
    %v766 = vpop.f32.mrf.mxu0
    %v767 = vadd.f32 %v675, %v766
    %768 = vmatmul.bf16.gmra.mxu0 %v656
    %v769 = vpop.f32.mrf.mxu0
    %v770 = vadd.f32 %v675, %v769
    %v771 = vpop.f32.mrf.mxu0
    %v772 = vadd.f32 %v675, %v771
    %773 = vdwg.mxu0
    %v774 = vtanh.pop %v735
    %v775 = vtanh.pop %v737
    %v776 = vtanh.pop %v740
    %v777 = vtanh.pop %v742
    %v778 = vtanh.pop %v745
    %v779 = vtanh.pop %v747
    %v780 = vtanh.pop %v750
    %v781 = vtanh.pop %v752
    %v782 = vtanh.pop %v755
    %v783 = vtanh.pop %v757
    %v784 = vtanh.pop %v760
    %v785 = vtanh.pop %v762
    %v786 = vtanh.pop %v765
    %v787 = vtanh.pop %v767
    %v788 = vtanh.pop %v770
    %v789 = vtanh.pop %v772
    %v790 = vpack.c.bf16 %v775, %v774
    %v791 = vpack.c.bf16 %v777, %v776
    %v792 = vpack.c.bf16 %v779, %v778
    %v793 = vpack.c.bf16 %v781, %v780
    %v794 = vpack.c.bf16 %v783, %v782
    %v795 = vpack.c.bf16 %v785, %v784
    %v796 = vpack.c.bf16 %v787, %v786
    %v797 = vpack.c.bf16 %v789, %v788
    %v798 = vld [vmem:[#allocation10] sm:$0xf]
    %v799 = vld [vmem:[#allocation10 + $0x4] sm:$0xf]
    %v800 = vld [vmem:[#allocation10 + $0x8] sm:$0xf]
    %v801 = vld [vmem:[#allocation10 + $0xc] sm:$0xf]
    %v802 = vld [vmem:[#allocation10 + $0x10] sm:$0xf]
    %v803 = vld [vmem:[#allocation10 + $0x14] sm:$0xf]
    %v804 = vld [vmem:[#allocation10 + $0x18] sm:$0xf]
    %v805 = vld [vmem:[#allocation10 + $0x1c] sm:$0xf]
    %v806 = vld [vmem:[#allocation10 + $0x20] sm:$0xf]
    %v807 = vld [vmem:[#allocation10 + $0x24] sm:$0xf]
    %v808 = vld [vmem:[#allocation10 + $0x28] sm:$0xf]
    %v809 = vld [vmem:[#allocation10 + $0x2c] sm:$0xf]
    %v810 = vld [vmem:[#allocation10 + $0x30] sm:$0xf]
    %v811 = vld [vmem:[#allocation10 + $0x34] sm:$0xf]
    %v812 = vld [vmem:[#allocation10 + $0x38] sm:$0xf]
    %v813 = vld [vmem:[#allocation10 + $0x3c] sm:$0xf]
    %v814 = vld [vmem:[%s8] sm:$0x1]
    %v816 = vperm.slane %v814, 0
    %v834 = vunpack.c.l.b16 %v798
    %v835 = vunpack.c.l.b16 %v799
    %v836 = vunpack.c.l.b16 %v800
    %v837 = vunpack.c.l.b16 %v801
    %v838 = vunpack.c.l.b16 %v802
    %v839 = vunpack.c.l.b16 %v803
    %v840 = vunpack.c.l.b16 %v804
    %v841 = vunpack.c.l.b16 %v805
    %v842 = vunpack.c.l.b16 %v806
    %v843 = vunpack.c.l.b16 %v807
    %v844 = vunpack.c.l.b16 %v808
    %v845 = vunpack.c.l.b16 %v809
    %v846 = vunpack.c.l.b16 %v810
    %v847 = vunpack.c.l.b16 %v811
    %v848 = vunpack.c.l.b16 %v812
    %v849 = vunpack.c.l.b16 %v813
    %v850 = vpack.c.b16 %v835, %v834
    %v851 = vpack.c.b16 %v837, %v836
    %v852 = vpack.c.b16 %v839, %v838
    %v853 = vpack.c.b16 %v841, %v840
    %v854 = vpack.c.b16 %v843, %v842
    %v855 = vpack.c.b16 %v845, %v844
    %v856 = vpack.c.b16 %v847, %v846
    %v857 = vpack.c.b16 %v849, %v848
    %866 = vmatpush.bf16.msra.mxu0 %v857
    %867 = vmatpush.bf16.msra.mxu0 %v856
    %868 = vmatpush.bf16.msra.mxu0 %v855
    %869 = vmatpush.bf16.msra.mxu0 %v854
    %870 = vmatpush.bf16.msra.mxu0 %v853
    %871 = vmatpush.bf16.msra.mxu0 %v852
    %872 = vmatpush.bf16.msra.mxu0 %v851
    %873 = vmatpush.bf16.msra.mxu0 %v850
    %874 = vmatmul.bf16.gmra.mxu0 %v790
    %v875 = vpop.f32.mrf.mxu0
    %v876 = vadd.f32 %v816, %v875
    %v877 = vpop.f32.mrf.mxu0
    %v878 = vadd.f32 %v816, %v877
    %879 = vmatmul.bf16.gmra.mxu0 %v791
    %v880 = vpop.f32.mrf.mxu0
    %v881 = vadd.f32 %v816, %v880
    %v882 = vpop.f32.mrf.mxu0
    %v883 = vadd.f32 %v816, %v882
    %884 = vmatmul.bf16.gmra.mxu0 %v792
    %v885 = vpop.f32.mrf.mxu0
    %v886 = vadd.f32 %v816, %v885
    %v887 = vpop.f32.mrf.mxu0
    %v888 = vadd.f32 %v816, %v887
    %889 = vmatmul.bf16.gmra.mxu0 %v793
    %v890 = vpop.f32.mrf.mxu0
    %v891 = vadd.f32 %v816, %v890
    %v892 = vpop.f32.mrf.mxu0
    %v893 = vadd.f32 %v816, %v892
    %894 = vmatmul.bf16.gmra.mxu0 %v794
    %v895 = vpop.f32.mrf.mxu0
    %v896 = vadd.f32 %v816, %v895
    %v897 = vpop.f32.mrf.mxu0
    %v898 = vadd.f32 %v816, %v897
    %899 = vmatmul.bf16.gmra.mxu0 %v795
    %v900 = vpop.f32.mrf.mxu0
    %v901 = vadd.f32 %v816, %v900
    %v902 = vpop.f32.mrf.mxu0
    %v903 = vadd.f32 %v816, %v902
    %904 = vmatmul.bf16.gmra.mxu0 %v796
    %v905 = vpop.f32.mrf.mxu0
    %v906 = vadd.f32 %v816, %v905
    %v907 = vpop.f32.mrf.mxu0
    %v908 = vadd.f32 %v816, %v907
    %909 = vmatmul.bf16.gmra.mxu0 %v797
    %v910 = vpop.f32.mrf.mxu0
    %v911 = vadd.f32 %v816, %v910
    %v912 = vpop.f32.mrf.mxu0
    %v913 = vadd.f32 %v816, %v912
    %914 = vdwg.mxu0
    %v915 = vpack.c.bf16 %v876, %v876
    %v916 = vpack.c.bf16 %v878, %v878
    %v917 = vpack.c.bf16 %v881, %v881
    %v918 = vpack.c.bf16 %v883, %v883
    %v919 = vpack.c.bf16 %v886, %v886
    %v920 = vpack.c.bf16 %v888, %v888
    %v921 = vpack.c.bf16 %v891, %v891
    %v922 = vpack.c.bf16 %v893, %v893
    %v923 = vpack.c.bf16 %v896, %v896
    %v924 = vpack.c.bf16 %v898, %v898
    %v925 = vpack.c.bf16 %v901, %v901
    %v926 = vpack.c.bf16 %v903, %v903
    %v927 = vpack.c.bf16 %v906, %v906
    %v928 = vpack.c.bf16 %v908, %v908
    %v929 = vpack.c.bf16 %v911, %v911
    %v930 = vpack.c.bf16 %v913, %v913
    %931 = vst [vmem:[#allocation11] sm:$0xf] %v915
    %932 = vst [vmem:[#allocation11 + $0x4] sm:$0xf] %v916
    %933 = vst [vmem:[#allocation11 + $0x8] sm:$0xf] %v917
    %934 = vst [vmem:[#allocation11 + $0xc] sm:$0xf] %v918
    %935 = vst [vmem:[#allocation11 + $0x10] sm:$0xf] %v919
    %936 = vst [vmem:[#allocation11 + $0x14] sm:$0xf] %v920
    %937 = vst [vmem:[#allocation11 + $0x18] sm:$0xf] %v921
    %938 = vst [vmem:[#allocation11 + $0x1c] sm:$0xf] %v922
    %939 = vst [vmem:[#allocation11 + $0x20] sm:$0xf] %v923
    %940 = vst [vmem:[#allocation11 + $0x24] sm:$0xf] %v924
    %941 = vst [vmem:[#allocation11 + $0x28] sm:$0xf] %v925
    %942 = vst [vmem:[#allocation11 + $0x2c] sm:$0xf] %v926
    %943 = vst [vmem:[#allocation11 + $0x30] sm:$0xf] %v927
    %944 = vst [vmem:[#allocation11 + $0x34] sm:$0xf] %v928
    %945 = vst [vmem:[#allocation11 + $0x38] sm:$0xf] %v929
    %946 = vst [vmem:[#allocation11 + $0x3c] sm:$0xf] %v930
    // Predicated region
    $region58: #{tpu_custom_call.1} parent=1 // pred_check
      _
    $region59: #{tpu_custom_call.1} parent=1 // pred_check_branch
      %948 = sbr.rel (0) target = $region61
    $region60: #{tpu_custom_call.1} parent=1 // pred_region
      %950 = vsyncadd [#allocation4], 0
      %s951 = sshll.u32 [#allocation11], 4
      %s952 = int_to_ptr.vmem [resolvable:$true] %s951
      %s953 = sshll.u32 %s9, 4
      %s954 = int_to_ptr.hbm [resolvable:$true] %s953
      %959 = dma.vmem_to_hbm [thread:$0]  %s952, 1024, %s954, [#allocation4], 64, 64, 4
    $region61: #{tpu_custom_call.1} parent=1 // pred_fallthru
      _
    // Predicated region
    $region62: #{tpu_custom_call.1} parent=1 // pred_check
      _
    $region63: #{tpu_custom_call.1} parent=1 // pred_check_branch
      %961 = sbr.rel (0) target = $region65
    $region64: #{tpu_custom_call.1} parent=1 // pred_region
      %963 = dma.done [#allocation4], 1024
    $region65: #{tpu_custom_call.1} parent=1 // pred_fallthru
      _
    %964 = vsyncpa [#allocation3], 1
    %965 = vsyncpa [#allocation6], 1
    %966 = vsyncpa [#allocation9], 1
    %967 = vsyncpa [#allocation4], 1

</llo_original>
